<compile_context>
chip_gen: v7x
topology: tpu7x:2x2x1
jax: 0.10.0
libtpu: 0.0.40
codegen_flags: <defaults>
</compile_context>

<pallas_src>
import numpy as np

import jax
import jax.numpy as jnp
from jax.experimental import pallas as pl
from jax.experimental.pallas import tpu as pltpu


# ----------------------------------------------------------------------------
# Parameter preparation (host side): banded conv weights + lane-tiled vectors
# ----------------------------------------------------------------------------

def _conv_band(w_taps, W):
    """Halo-free block-Toeplitz band for a 3x3 zero-padded conv.

    w_taps : (3, 3, Cin, Cout)   (== torch weight.permute(2, 3, 1, 0))
    returns: np.float32 (3, W*Cin, W*Cout) such that
        y_dense[i] = sum_dy x_dense[i + dy - 1] @ band[dy]
    where x_dense[r, w*Cin + ci] is an (unpadded) NHWC row flattened over (W, Cin);
    out-of-range horizontal taps are simply omitted (they would multiply zeros), and
    the vertical padding is supplied by two zero halo rows in the VMEM scratch.
    """
    w = np.asarray(w_taps, np.float32)
    _, _, Cin, Cout = w.shape
    band = np.zeros((3, W * Cin, W * Cout), np.float32)
    for dy in range(3):
        for dx in range(3):
            for j in range(W):
                m = j + dx - 1
                if 0 <= m < W:
                    band[dy, m * Cin:(m + 1) * Cin, j * Cout:(j + 1) * Cout] = w[dy, dx]
    return band


def _tile_chan(v, W):
    """Per-channel vector (C,) -> lane-dense row (1, W*C) matching the (w*C + c) layout."""
    return jnp.tile(jnp.asarray(v, jnp.float32), W).reshape(1, -1)


def _round_up(x, m):
    return ((x + m - 1) // m) * m


def _largest_divisor_leq(n, cap):
    cap = max(1, min(n, cap))
    for d in range(cap, 0, -1):
        if n % d == 0:
            return d
    return 1


def init_raw_params(key, in_channels, out_channels):
    ks = jax.random.split(key, 12)
    f = jnp.float32

    def taps(k, cin, cout):
        return 0.1 * jax.random.normal(k, (3, 3, cin, cout), dtype=f)

    C = out_channels
    dc = {
        "bn_scale": 1.0 + 0.05 * jax.random.normal(ks[0], (in_channels,), dtype=f),
        "bn_shift": 0.05 * jax.random.normal(ks[1], (in_channels,), dtype=f),
        "w1": taps(ks[2], in_channels, C),
        "b1": 0.05 * jax.random.normal(ks[3], (C,), dtype=f),
        "a1": jnp.full((C,), 0.25, dtype=f),
        "w2": taps(ks[4], C, C),
        "b2": 0.05 * jax.random.normal(ks[5], (C,), dtype=f),
        "a2": jnp.full((C,), 0.25, dtype=f),
        "a3": jnp.full((C,), 0.25, dtype=f),
    }
    gru = {
        "w_ih": taps(ks[6], 2 * C, 2 * C),   # input [x; h] -> output [r; z]
        "b_ih": 0.05 * jax.random.normal(ks[7], (2 * C,), dtype=f),
        "w_hh": taps(ks[8], 2 * C, C),       # input [x; r*h] -> candidate c
        "b_hh": 0.05 * jax.random.normal(ks[9], (C,), dtype=f),
    }
    return {"double_conv": dc, "conv_gru": gru}


def prepare_params(raw, W):
    """Fold raw (tap-form) params into the kernel-ready banded / lane-tiled form."""
    dc = raw["double_conv"]
    gr = raw["conv_gru"]
    C = int(gr["w_hh"].shape[3])
    WC = W * C
    bf = jnp.bfloat16

    dcp = {
        "bn_scale": _tile_chan(dc["bn_scale"], W),
        "bn_shift": _tile_chan(dc["bn_shift"], W),
        "band1": jnp.asarray(_conv_band(dc["w1"], W), bf),
        "b1": _tile_chan(dc["b1"], W),
        "a1": _tile_chan(dc["a1"], W),
        "band2": jnp.asarray(_conv_band(dc["w2"], W), bf),
        "b2": _tile_chan(dc["b2"], W),
        "a2": _tile_chan(dc["a2"], W),
        "a3": _tile_chan(dc["a3"], W),
    }

    w_ih = np.asarray(gr["w_ih"], np.float32)
    w_hh = np.asarray(gr["w_hh"], np.float32)
    # Fused gate/candidate weight A:
    #   rows [0, WC)  : x lanes,   rows [WC, 2WC) : h lanes
    #   cols [0, WC)  : r,  [WC, 2WC) : z,  [2WC, 3WC) : candidate's x-contribution
    a_x = np.concatenate([_conv_band(w_ih[:, :, :C, :C], W),
                          _conv_band(w_ih[:, :, :C, C:], W),
                          _conv_band(w_hh[:, :, :C, :], W)], axis=2)
    a_h = np.concatenate([_conv_band(w_ih[:, :, C:, :C], W),
                          _conv_band(w_ih[:, :, C:, C:], W),
                          np.zeros((3, WC, WC), np.float32)], axis=2)
    A = np.concatenate([a_x, a_h], axis=1)                     # (3, 2*WC, 3*WC)
    Ch = _conv_band(w_hh[:, :, C:, :], W)                      # (3, WC, WC)  (r*h path)
    b_rzc = jnp.concatenate([_tile_chan(gr["b_ih"][:C], W),
                             _tile_chan(gr["b_ih"][C:], W),
                             _tile_chan(gr["b_hh"], W)], axis=1)   # (1, 3*WC)
    gp = {"A": jnp.asarray(A, bf), "Ch": jnp.asarray(Ch, bf), "b_rzc": b_rzc}
    return {"double_conv": dcp, "conv_gru": gp}


# ----------------------------------------------------------------------------
# Pallas kernels
# ----------------------------------------------------------------------------

def _make_double_conv_kernel(H, WCi, WCo, NB, FS):
    """BN + conv1 + PReLU + conv2 + PReLU + PReLU for NB frames per grid step."""
    M = NB * FS - 2
    bf = jnp.bfloat16

    def kernel(x_ref, bns_ref, bnt_ref, w1_ref, b1_ref, a1_ref,
               w2_ref, b2_ref, a2_ref, a3_ref, o_ref, xp_ref, yp_ref):
        # Zero only the halo / alignment-pad rows (never overwritten by the interior
        # stores).  Done unconditionally each step: the grid axis is "parallel", so a
        # one-time init keyed on program_id(0)==0 would be unsafe under megacore.
        ztop_i = jnp.zeros((1, WCi), jnp.float32)
        zbot_i = jnp.zeros((FS - H - 1, WCi), jnp.float32)
        ztop_o = jnp.zeros((1, WCo), jnp.float32)
        zbot_o = jnp.zeros((FS - H - 1, WCo), jnp.float32)
        bns = bns_ref[...]
        bnt = bnt_ref[...]
        for f in range(NB):
            base = f * FS
            xp_ref[base:base + 1, :] = ztop_i
            xp_ref[base + H + 1:base + FS, :] = zbot_i
            yp_ref[base:base + 1, :] = ztop_o
            yp_ref[base + H + 1:base + FS, :] = zbot_o
            # eval-mode BatchNorm fused in (applied before the zero halo, matching
            # PyTorch's pad-after-BN border semantics).
            xp_ref[base + 1:base + 1 + H, :] = x_ref[f] * bns + bnt

        # conv1: 3 banded MXU matmuls over all NB stacked frames (bf16 in, f32 acc)
        acc = jnp.dot(xp_ref[0:M, :].astype(bf), w1_ref[0],
                      preferred_element_type=jnp.float32)
        for dy in (1, 2):
            acc = acc + jnp.dot(xp_ref[dy:dy + M, :].astype(bf), w1_ref[dy],
                                preferred_element_type=jnp.float32)
        y = acc + b1_ref[...]
        a1 = a1_ref[...]
        y = jnp.where(y >= 0.0, y, a1 * y)                     # PReLU(a1)

        for f in range(NB):
            base = f * FS
            yp_ref[base + 1:base + 1 + H, :] = y[base:base + H, :]

        # conv2 (+ PReLU(a2) and PReLU(a3) fused in the epilogue)
        acc = jnp.dot(yp_ref[0:M, :].astype(bf), w2_ref[0],
                      preferred_element_type=jnp.float32)
        for dy in (1, 2):
            acc = acc + jnp.dot(yp_ref[dy:dy + M, :].astype(bf), w2_ref[dy],
                                preferred_element_type=jnp.float32)
        y = acc + b2_ref[...]
        a2 = a2_ref[...]
        a3 = a3_ref[...]
        y = jnp.where(y >= 0.0, y, a2 * y)
        y = jnp.where(y >= 0.0, y, a3 * y)
        for f in range(NB):
            o_ref[f] = y[f * FS:f * FS + H, :].astype(o_ref.dtype)

    return kernel


def _make_conv_gru_kernel(H, WC, TB, seq2seq):
    """TB ConvGRU timesteps per grid step; hidden state lives in the resident
    (b, 0, 0) output block across the 'arbitrary' t axis."""
    bf = jnp.bfloat16

    def impl(xs_ref, h0_ref, a_ref, b_ref, ch_ref, o_ref, hout_ref, xh_ref, rh_ref):
        @pl.when(pl.program_id(1) == 0)
        def _():
            hout_ref[0] = h0_ref[0]
            # zero the two halo rows once per batch row (safe: t is the inner axis)
            z2 = jnp.zeros((1, 2 * WC), jnp.float32)
            z1 = jnp.zeros((1, WC), jnp.float32)
            xh_ref[0:1, :] = z2
            xh_ref[H + 1:H + 2, :] = z2
            rh_ref[0:1, :] = z1
            rh_ref[H + 1:H + 2, :] = z1

        bias = jnp.broadcast_to(b_ref[...], (H, 3 * WC))        # hoisted out of the loop
        h = hout_ref[0]                                         # (H, WC) f32, resident
        for tt in range(TB):
            # interior of the combined [x | h] padded buffer
            xh_ref[1:H + 1, 0:WC] = xs_ref[0, tt]
            xh_ref[1:H + 1, WC:2 * WC] = h

            # gates + candidate-x contribution: ONE banded matmul per dy
            g = jnp.dot(xh_ref[0:H, :].astype(bf), a_ref[0],
                        preferred_element_type=jnp.float32)
            for dy in (1, 2):
                g = g + jnp.dot(xh_ref[dy:dy + H, :].astype(bf), a_ref[dy],
                                preferred_element_type=jnp.float32)
            g = g + bias
            rz = jax.nn.sigmoid(g[:, :2 * WC])
            r = rz[:, :WC]
            z = rz[:, WC:]

            # candidate: c = tanh(cx_part + conv3x3(r*h))
            rh_ref[1:H + 1, :] = r * h
            c = g[:, 2 * WC:]
            for dy in range(3):
                c = c + jnp.dot(rh_ref[dy:dy + H, :].astype(bf), ch_ref[dy],
                                preferred_element_type=jnp.float32)
            c = jnp.tanh(c)

            h = (1.0 - z) * h + z * c                           # PyTorch ConvGRU update
            if seq2seq:
                o_ref[0, tt] = h.astype(o_ref.dtype)
        hout_ref[0] = h.astype(hout_ref.dtype)

    if seq2seq:
        def kernel(xs_ref, h0_ref, a_ref, b_ref, ch_ref, o_ref, hout_ref,
                   xh_ref, rh_ref):
            impl(xs_ref, h0_ref, a_ref, b_ref, ch_ref, o_ref, hout_ref, xh_ref, rh_ref)
    else:
        def kernel(xs_ref, h0_ref, a_ref, b_ref, ch_ref, hout_ref, xh_ref, rh_ref):
            impl(xs_ref, h0_ref, a_ref, b_ref, ch_ref, None, hout_ref, xh_ref, rh_ref)
    return kernel


# ----------------------------------------------------------------------------
# pallas_call wrappers
# ----------------------------------------------------------------------------

def double_conv_fused(p, x_dense, H, W, Cin):
    """x_dense: (N, H, W*Cin) -> (N, H, W*Cout). NB frames fused per grid step."""
    N = x_dense.shape[0]
    WCi = W * Cin
    WCo = p["b1"].shape[1]
    assert WCi % 128 == 0 and WCo % 128 == 0, \
        "banded DoubleConv kernel assumes lane-dense W*C (multiple of 128)"
    NB = _largest_divisor_leq(N, max(1, min(N // 2, 8)))  # keep >=2 blocks for v7x
    FS = H + 2 if NB == 1 else _round_up(H + 2, 8)        # frame stride (sublane aligned)
    kernel = _make_double_conv_kernel(H, WCi, WCo, NB, FS)
    const2 = lambda n: (0, 0)
    const3 = lambda n: (0, 0, 0)
    return pl.pallas_call(
        kernel,
        grid=(N // NB,),
        in_specs=[
            pl.BlockSpec((NB, H, WCi), lambda n: (n, 0, 0)),
            pl.BlockSpec((1, WCi), const2),
            pl.BlockSpec((1, WCi), const2),
            pl.BlockSpec((3, WCi, WCo), const3),
            pl.BlockSpec((1, WCo), const2),
            pl.BlockSpec((1, WCo), const2),
            pl.BlockSpec((3, WCo, WCo), const3),
            pl.BlockSpec((1, WCo), const2),
            pl.BlockSpec((1, WCo), const2),
            pl.BlockSpec((1, WCo), const2),
        ],
        out_specs=pl.BlockSpec((NB, H, WCo), lambda n: (n, 0, 0)),
        out_shape=jax.ShapeDtypeStruct((N, H, WCo), jnp.float32),
        scratch_shapes=[pltpu.VMEM((NB * FS, WCi), jnp.float32),
                        pltpu.VMEM((NB * FS, WCo), jnp.float32)],
        compiler_params=pltpu.CompilerParams(
            dimension_semantics=("parallel",),
            vmem_limit_bytes=32 * 1024 * 1024),
    )(x_dense, p["bn_scale"], p["bn_shift"], p["band1"], p["b1"], p["a1"],
      p["band2"], p["b2"], p["a2"], p["a3"])


def conv_gru_fused(p, xs_dense, h0_dense, H, W, C, seq2seq):
    """xs_dense: (B, T, H, W*C), h0_dense: (B, H, W*C).  One kernel, TB steps/block."""
    B, T = xs_dense.shape[0], xs_dense.shape[1]
    WC = W * C
    assert WC % 128 == 0, "banded ConvGRU kernel assumes lane-dense W*C (multiple of 128)"
    TB = _largest_divisor_leq(T, 4)
    kernel = _make_conv_gru_kernel(H, WC, TB, seq2seq)

    in_specs = [
        pl.BlockSpec((1, TB, H, WC), lambda b, t: (b, t, 0, 0)),
        pl.BlockSpec((1, H, WC), lambda b, t: (b, 0, 0)),
        pl.BlockSpec((3, 2 * WC, 3 * WC), lambda b, t: (0, 0, 0)),
        pl.BlockSpec((1, 3 * WC), lambda b, t: (0, 0)),
        pl.BlockSpec((3, WC, WC), lambda b, t: (0, 0, 0)),
    ]
    hout_spec = pl.BlockSpec((1, H, WC), lambda b, t: (b, 0, 0))
    hout_shape = jax.ShapeDtypeStruct((B, H, WC), jnp.float32)
    if seq2seq:
        out_specs = [pl.BlockSpec((1, TB, H, WC), lambda b, t: (b, t, 0, 0)), hout_spec]
        out_shape = [jax.ShapeDtypeStruct((B, T, H, WC), jnp.float32), hout_shape]
    else:
        out_specs = hout_spec
        out_shape = hout_shape

    out = pl.pallas_call(
        kernel,
        grid=(B, T // TB),
        in_specs=in_specs,
        out_specs=out_specs,
        out_shape=out_shape,
        scratch_shapes=[pltpu.VMEM((H + 2, 2 * WC), jnp.float32),   # padded [x | h]
                        pltpu.VMEM((H + 2, WC), jnp.float32)],      # padded r*h
        compiler_params=pltpu.CompilerParams(
            dimension_semantics=("parallel", "arbitrary"),
            vmem_limit_bytes=32 * 1024 * 1024),
    )(xs_dense, h0_dense, p["A"], p["b_rzc"], p["Ch"])
    if seq2seq:
        return out[0], out[1]
    return out, out


# ----------------------------------------------------------------------------
# Plain-JAX glue (layout only)
# ----------------------------------------------------------------------------

def pixel_shuffle_nchw(x, r):
    """PyTorch PixelShuffle: (N, C*r*r, H, W) -> (N, C, H*r, W*r)."""
    N, Cr2, H, W = x.shape
    C = Cr2 // (r * r)
    x = x.reshape(N, C, r, r, H, W)
    x = jnp.transpose(x, (0, 1, 4, 2, 5, 3))
    return x.reshape(N, C, H * r, W * r)


def recurrent_up_forward(params, x1, x2, T, r=None, seq2seq=False, upscale_factor=2):
    """PyTorch-semantics forward.  x1/x2/r are NCHW; returns (o, r_new) in NCHW."""
    x1u = pixel_shuffle_nchw(x1, upscale_factor)
    x = jnp.concatenate([x2, x1u], axis=1)                       # (N, Cin, H, W)
    N, Cin, H, W = x.shape
    x = jnp.transpose(x, (0, 2, 3, 1)).reshape(N, H, W * Cin)    # lane-dense rows

    y = double_conv_fused(params["double_conv"], x, H, W, Cin)   # (N, H, W*Cout)
    C = y.shape[-1] // W
    B = N // T
    xs = y.reshape(B, T, H, W * C)

    if r is None:
        h0 = jnp.zeros((B, H, W * C), jnp.float32)
    else:
        h0 = jnp.transpose(r, (0, 2, 3, 1)).reshape(B, H, W * C)

    o_d, h_d = conv_gru_fused(params["conv_gru"], xs, h0, H, W, C, seq2seq)

    if seq2seq:
        o = jnp.transpose(o_d.reshape(B, T, H, W, C), (0, 1, 4, 2, 3))
    else:
        o = jnp.transpose(o_d.reshape(B, H, W, C), (0, 3, 1, 2))
    h = jnp.transpose(h_d.reshape(B, H, W, C), (0, 3, 1, 2))
    return o, h


# ----------------------------------------------------------------------------
# float64 numpy reference (mirrors the PyTorch module exactly)
# ----------------------------------------------------------------------------

def _np_conv3x3(x, w, b):
    N, H, W, Ci = x.shape
    Co = w.shape[-1]
    xp = np.zeros((N, H + 2, W + 2, Ci), x.dtype)
    xp[:, 1:H + 1, 1:W + 1, :] = x
    y = np.zeros((N, H, W, Co), x.dtype)
    for dy in range(3):
        for dx in range(3):
            y += np.einsum("nhwc,cd->nhwd", xp[:, dy:dy + H, dx:dx + W, :], w[dy, dx])
    return y + b


def _np_prelu(x, a):
    return np.where(x >= 0, x, a * x)


def numpy_reference(raw, x1, x2, T, upscale=2, seq2seq=False):
    x1 = x1.astype(np.float64)
    x2 = x2.astype(np.float64)
    N, Cr2, H1, W1 = x1.shape
    u = upscale
    C1 = Cr2 // (u * u)
    x1u = x1.reshape(N, C1, u, u, H1, W1).transpose(0, 1, 4, 2, 5, 3)
    x1u = x1u.reshape(N, C1, H1 * u, W1 * u)
    x = np.concatenate([x2, x1u], axis=1).transpose(0, 2, 3, 1)   # NHWC

    dc = {k: np.asarray(v, np.float64) for k, v in raw["double_conv"].items()}
    x = x * dc["bn_scale"] + dc["bn_shift"]
    x = _np_prelu(_np_conv3x3(x, dc["w1"], dc["b1"]), dc["a1"])
    x = _np_conv3x3(x, dc["w2"], dc["b2"])
    x = _np_prelu(_np_prelu(x, dc["a2"]), dc["a3"])

    Nf, H, W, C = x.shape
    B = Nf // T
    xs = x.reshape(B, T, H, W, C)

    g = {k: np.asarray(v, np.float64) for k, v in raw["conv_gru"].items()}
    h = np.zeros((B, H, W, C), np.float64)
    outs = []
    for t in range(T):
        xt = xs[:, t]
        rz = 1.0 / (1.0 + np.exp(-_np_conv3x3(np.concatenate([xt, h], -1),
                                              g["w_ih"], g["b_ih"])))
        r_g, z_g = rz[..., :C], rz[..., C:]
        c = np.tanh(_np_conv3x3(np.concatenate([xt, r_g * h], -1),
                                g["w_hh"], g["b_hh"]))
        h = (1.0 - z_g) * h + z_g * c
        outs.append(h)
    o = np.stack(outs, axis=1) if seq2seq else h
    o_nchw = o.transpose(0, 1, 4, 2, 3) if seq2seq else o.transpose(0, 3, 1, 2)
    h_nchw = h.transpose(0, 3, 1, 2)
    return o_nchw, h_nchw


# ----------------------------------------------------------------------------
# Main
# ----------------------------------------------------------------------------

if __name__ == "__main__":
    key = jax.random.PRNGKey(0)
    k_p, k_x1, k_x2 = jax.random.split(key, 3)

    B, T = 2, 2
    N = B * T
    upscale = 2
    C1 = 16                           # pre-shuffle channels of x1
    C1s = C1 // (upscale * upscale)   # 4 after PixelShuffle
    C2 = 4                            # skip-connection channels
    in_channels = C1s + C2            # 8 (DoubleConv input)
    out_channels = 8
    H1 = W1 = 8
    H = W = H1 * upscale              # 16 -> W * out_channels == 128 (lane dense)

    raw = init_raw_params(k_p, in_channels, out_channels)
    params = prepare_params(raw, W)

    x1 = jax.random.normal(k_x1, (N, C1, H1, W1), dtype=jnp.float32)
    x2 = jax.random.normal(k_x2, (N, C2, H, W), dtype=jnp.float32)

    o, r_new = recurrent_up_forward(params, x1, x2, T, r=None, seq2seq=False,
                                    upscale_factor=upscale)
    o = jax.block_until_ready(o)
    r_new = jax.block_until_ready(r_new)
    assert o.shape == (B, out_channels, H, W), o.shape
    assert r_new.shape == (B, out_channels, H, W), r_new.shape
    assert bool(jnp.all(jnp.isfinite(o))) and bool(jnp.all(jnp.isfinite(r_new)))

    # seq2seq path (second kernel instantiation)
    o_seq, _ = recurrent_up_forward(params, x1, x2, T, r=None, seq2seq=True,
                                    upscale_factor=upscale)
    o_seq = jax.block_until_ready(o_seq)
    assert o_seq.shape == (B, T, out_channels, H, W), o_seq.shape

    # numerical check against the float64 numpy reference of the PyTorch forward
    # (bf16 MXU path: error grows ~1 order of magnitude vs. pure-f32 but stays well
    #  inside the tolerance)
    o_ref, h_ref = numpy_reference(raw, np.asarray(x1), np.asarray(x2), T,
                                   upscale=upscale, seq2seq=False)
    o_seq_ref, _ = numpy_reference(raw, np.asarray(x1), np.asarray(x2), T,
                                   upscale=upscale, seq2seq=True)
    err_o = float(np.max(np.abs(np.asarray(o, np.float64) - o_ref)))
    err_h = float(np.max(np.abs(np.asarray(r_new, np.float64) - h_ref)))
    err_s = float(np.max(np.abs(np.asarray(o_seq, np.float64) - o_seq_ref)))
    assert err_o < 5e-2 and err_h < 5e-2 and err_s < 5e-2, (err_o, err_h, err_s)

    print("KERNEL_OK")
</pallas_src>

<mosaic_0001>
module attributes {stable_mosaic.version = 11 : i64} {
  func.func @kernel(%arg0: i32, %arg1: memref<2x16x128xf32, #tpu.memory_space<vmem>>, %arg2: memref<1x128xf32, #tpu.memory_space<vmem>>, %arg3: memref<1x128xf32, #tpu.memory_space<vmem>>, %arg4: memref<3x128x128xbf16, #tpu.memory_space<vmem>>, %arg5: memref<1x128xf32, #tpu.memory_space<vmem>>, %arg6: memref<1x128xf32, #tpu.memory_space<vmem>>, %arg7: memref<3x128x128xbf16, #tpu.memory_space<vmem>>, %arg8: memref<1x128xf32, #tpu.memory_space<vmem>>, %arg9: memref<1x128xf32, #tpu.memory_space<vmem>>, %arg10: memref<1x128xf32, #tpu.memory_space<vmem>>, %arg11: memref<2x16x128xf32, #tpu.memory_space<vmem>>, %arg12: memref<48x128xf32, #tpu.memory_space<vmem>>, %arg13: memref<48x128xf32, #tpu.memory_space<vmem>>) attributes {dimension_semantics = [#tpu.dimension_semantics<parallel>], iteration_bounds = array<i64: 2>, scalar_prefetch = 0 : i64, scratch_operands = 2 : i64, tpu.core_type = #tpu.core_type<tc>, window_params = [{transform_indices = @transform_0, window_bounds = array<i64: 2, 16, 128>}, {pipeline_mode = #tpu.pipeline_mode<synchronous>, transform_indices = @transform_1, window_bounds = array<i64: 1, 128>}, {pipeline_mode = #tpu.pipeline_mode<synchronous>, transform_indices = @transform_2, window_bounds = array<i64: 1, 128>}, {pipeline_mode = #tpu.pipeline_mode<synchronous>, transform_indices = @transform_3, window_bounds = array<i64: 3, 128, 128>}, {pipeline_mode = #tpu.pipeline_mode<synchronous>, transform_indices = @transform_4, window_bounds = array<i64: 1, 128>}, {pipeline_mode = #tpu.pipeline_mode<synchronous>, transform_indices = @transform_5, window_bounds = array<i64: 1, 128>}, {pipeline_mode = #tpu.pipeline_mode<synchronous>, transform_indices = @transform_6, window_bounds = array<i64: 3, 128, 128>}, {pipeline_mode = #tpu.pipeline_mode<synchronous>, transform_indices = @transform_7, window_bounds = array<i64: 1, 128>}, {pipeline_mode = #tpu.pipeline_mode<synchronous>, transform_indices = @transform_8, window_bounds = array<i64: 1, 128>}, {pipeline_mode = #tpu.pipeline_mode<synchronous>, transform_indices = @transform_9, window_bounds = array<i64: 1, 128>}, {transform_indices = @transform_10, window_bounds = array<i64: 2, 16, 128>}]} {
    %cst = arith.constant 0.000000e+00 : f32
    %0 = vector.broadcast %cst : f32 to vector<1x128xf32>
    %cst_0 = arith.constant 0.000000e+00 : f32
    %1 = vector.broadcast %cst_0 : f32 to vector<7x128xf32>
    %cst_1 = arith.constant 0.000000e+00 : f32
    %2 = vector.broadcast %cst_1 : f32 to vector<1x128xf32>
    %cst_2 = arith.constant 0.000000e+00 : f32
    %3 = vector.broadcast %cst_2 : f32 to vector<7x128xf32>
    %c0 = arith.constant 0 : index
    %c0_3 = arith.constant 0 : index
    %4 = vector.load %arg2[%c0, %c0_3] : memref<1x128xf32, #tpu.memory_space<vmem>>, vector<1x128xf32>
    %c0_4 = arith.constant 0 : index
    %c0_5 = arith.constant 0 : index
    %5 = vector.load %arg3[%c0_4, %c0_5] : memref<1x128xf32, #tpu.memory_space<vmem>>, vector<1x128xf32>
    %c0_6 = arith.constant 0 : index
    %c0_7 = arith.constant 0 : index
    %6 = vector.load %arg12[%c0_6, %c0_7] : memref<48x128xf32, #tpu.memory_space<vmem>>, vector<1x128xf32>
    tpu.vector_store %arg12[%c0_6, %c0_7], %0 {strides = array<i32>} : memref<48x128xf32, #tpu.memory_space<vmem>>, vector<1x128xf32>,
    %c17 = arith.constant 17 : index
    %c0_8 = arith.constant 0 : index
    %7 = vector.load %arg12[%c17, %c0_8] : memref<48x128xf32, #tpu.memory_space<vmem>>, vector<7x128xf32>
    tpu.vector_store %arg12[%c17, %c0_8], %1 {strides = array<i32>} : memref<48x128xf32, #tpu.memory_space<vmem>>, vector<7x128xf32>,
    %c0_9 = arith.constant 0 : index
    %c0_10 = arith.constant 0 : index
    %8 = vector.load %arg13[%c0_9, %c0_10] : memref<48x128xf32, #tpu.memory_space<vmem>>, vector<1x128xf32>
    tpu.vector_store %arg13[%c0_9, %c0_10], %2 {strides = array<i32>} : memref<48x128xf32, #tpu.memory_space<vmem>>, vector<1x128xf32>,
    %c17_11 = arith.constant 17 : index
    %c0_12 = arith.constant 0 : index
    %9 = vector.load %arg13[%c17_11, %c0_12] : memref<48x128xf32, #tpu.memory_space<vmem>>, vector<7x128xf32>
    tpu.vector_store %arg13[%c17_11, %c0_12], %3 {strides = array<i32>} : memref<48x128xf32, #tpu.memory_space<vmem>>, vector<7x128xf32>,
    %c0_13 = arith.constant 0 : index
    %c0_14 = arith.constant 0 : index
    %c0_15 = arith.constant 0 : index
    %10 = vector.load %arg1[%c0_13, %c0_14, %c0_15] : memref<2x16x128xf32, #tpu.memory_space<vmem>>, vector<1x16x128xf32>
    %11 = vector.shape_cast %10 : vector<1x16x128xf32> to vector<16x128xf32>
    %12 = vector.broadcast %4 : vector<1x128xf32> to vector<16x128xf32>
    %13 = arith.mulf %11, %12 : vector<16x128xf32>
    %14 = vector.broadcast %5 : vector<1x128xf32> to vector<16x128xf32>
    %15 = arith.addf %13, %14 : vector<16x128xf32>
    %c1 = arith.constant 1 : index
    %c0_16 = arith.constant 0 : index
    %16 = vector.load %arg12[%c1, %c0_16] : memref<48x128xf32, #tpu.memory_space<vmem>>, vector<16x128xf32>
    tpu.vector_store %arg12[%c1, %c0_16], %15 {strides = array<i32>} : memref<48x128xf32, #tpu.memory_space<vmem>>, vector<16x128xf32>,
    %c24 = arith.constant 24 : index
    %c0_17 = arith.constant 0 : index
    %17 = vector.load %arg12[%c24, %c0_17] : memref<48x128xf32, #tpu.memory_space<vmem>>, vector<1x128xf32>
    tpu.vector_store %arg12[%c24, %c0_17], %0 {strides = array<i32>} : memref<48x128xf32, #tpu.memory_space<vmem>>, vector<1x128xf32>,
    %c41 = arith.constant 41 : index
    %c0_18 = arith.constant 0 : index
    %18 = vector.load %arg12[%c41, %c0_18] : memref<48x128xf32, #tpu.memory_space<vmem>>, vector<7x128xf32>
    tpu.vector_store %arg12[%c41, %c0_18], %1 {strides = array<i32>} : memref<48x128xf32, #tpu.memory_space<vmem>>, vector<7x128xf32>,
    %c24_19 = arith.constant 24 : index
    %c0_20 = arith.constant 0 : index
    %19 = vector.load %arg13[%c24_19, %c0_20] : memref<48x128xf32, #tpu.memory_space<vmem>>, vector<1x128xf32>
    tpu.vector_store %arg13[%c24_19, %c0_20], %2 {strides = array<i32>} : memref<48x128xf32, #tpu.memory_space<vmem>>, vector<1x128xf32>,
    %c41_21 = arith.constant 41 : index
    %c0_22 = arith.constant 0 : index
    %20 = vector.load %arg13[%c41_21, %c0_22] : memref<48x128xf32, #tpu.memory_space<vmem>>, vector<7x128xf32>
    tpu.vector_store %arg13[%c41_21, %c0_22], %3 {strides = array<i32>} : memref<48x128xf32, #tpu.memory_space<vmem>>, vector<7x128xf32>,
    %c1_23 = arith.constant 1 : index
    %c0_24 = arith.constant 0 : index
    %c0_25 = arith.constant 0 : index
    %21 = vector.load %arg1[%c1_23, %c0_24, %c0_25] : memref<2x16x128xf32, #tpu.memory_space<vmem>>, vector<1x16x128xf32>
    %22 = vector.shape_cast %21 : vector<1x16x128xf32> to vector<16x128xf32>
    %23 = vector.broadcast %4 : vector<1x128xf32> to vector<16x128xf32>
    %24 = arith.mulf %22, %23 : vector<16x128xf32>
    %25 = vector.broadcast %5 : vector<1x128xf32> to vector<16x128xf32>
    %26 = arith.addf %24, %25 : vector<16x128xf32>
    %c25 = arith.constant 25 : index
    %c0_26 = arith.constant 0 : index
    %27 = vector.load %arg12[%c25, %c0_26] : memref<48x128xf32, #tpu.memory_space<vmem>>, vector<16x128xf32>
    tpu.vector_store %arg12[%c25, %c0_26], %26 {strides = array<i32>} : memref<48x128xf32, #tpu.memory_space<vmem>>, vector<16x128xf32>,
    %c0_27 = arith.constant 0 : index
    %c0_28 = arith.constant 0 : index
    %28 = vector.load %arg12[%c0_27, %c0_28] : memref<48x128xf32, #tpu.memory_space<vmem>>, vector<46x128xf32>
    %29 = arith.truncf %28 : vector<46x128xf32> to vector<46x128xbf16>
    %c0_29 = arith.constant 0 : index
    %c0_30 = arith.constant 0 : index
    %c0_31 = arith.constant 0 : index
    %30 = vector.load %arg4[%c0_29, %c0_30, %c0_31] : memref<3x128x128xbf16, #tpu.memory_space<vmem>>, vector<1x128x128xbf16>
    %31 = vector.shape_cast %30 : vector<1x128x128xbf16> to vector<128x128xbf16>
    %cst_32 = arith.constant dense<0.000000e+00> : vector<46x128xf32>
    %32 = tpu.matmul %29, %31, %cst_32 {dimension_numbers = #tpu.dot_dimension_numbers<[1], [0], [0], [1], [0, 0, 1, 1], [], []>} : vector<46x128xbf16>, vector<128x128xbf16>, vector<46x128xf32> -> vector<46x128xf32>
    %c1_33 = arith.constant 1 : index
    %c0_34 = arith.constant 0 : index
    %33 = vector.load %arg12[%c1_33, %c0_34] : memref<48x128xf32, #tpu.memory_space<vmem>>, vector<46x128xf32>
    %34 = arith.truncf %33 : vector<46x128xf32> to vector<46x128xbf16>
    %c1_35 = arith.constant 1 : index
    %c0_36 = arith.constant 0 : index
    %c0_37 = arith.constant 0 : index
    %35 = vector.load %arg4[%c1_35, %c0_36, %c0_37] : memref<3x128x128xbf16, #tpu.memory_space<vmem>>, vector<1x128x128xbf16>
    %36 = vector.shape_cast %35 : vector<1x128x128xbf16> to vector<128x128xbf16>
    %cst_38 = arith.constant dense<0.000000e+00> : vector<46x128xf32>
    %37 = tpu.matmul %34, %36, %cst_38 {dimension_numbers = #tpu.dot_dimension_numbers<[1], [0], [0], [1], [0, 0, 1, 1], [], []>} : vector<46x128xbf16>, vector<128x128xbf16>, vector<46x128xf32> -> vector<46x128xf32>
    %38 = arith.addf %32, %37 : vector<46x128xf32>
    %c2 = arith.constant 2 : index
    %c0_39 = arith.constant 0 : index
    %39 = vector.load %arg12[%c2, %c0_39] : memref<48x128xf32, #tpu.memory_space<vmem>>, vector<46x128xf32>
    %40 = arith.truncf %39 : vector<46x128xf32> to vector<46x128xbf16>
    %c2_40 = arith.constant 2 : index
    %c0_41 = arith.constant 0 : index
    %c0_42 = arith.constant 0 : index
    %41 = vector.load %arg4[%c2_40, %c0_41, %c0_42] : memref<3x128x128xbf16, #tpu.memory_space<vmem>>, vector<1x128x128xbf16>
    %42 = vector.shape_cast %41 : vector<1x128x128xbf16> to vector<128x128xbf16>
    %cst_43 = arith.constant dense<0.000000e+00> : vector<46x128xf32>
    %43 = tpu.matmul %40, %42, %cst_43 {dimension_numbers = #tpu.dot_dimension_numbers<[1], [0], [0], [1], [0, 0, 1, 1], [], []>} : vector<46x128xbf16>, vector<128x128xbf16>, vector<46x128xf32> -> vector<46x128xf32>
    %44 = arith.addf %38, %43 : vector<46x128xf32>
    %c0_44 = arith.constant 0 : index
    %c0_45 = arith.constant 0 : index
    %45 = vector.load %arg5[%c0_44, %c0_45] : memref<1x128xf32, #tpu.memory_space<vmem>>, vector<1x128xf32>
    %46 = vector.broadcast %45 : vector<1x128xf32> to vector<46x128xf32>
    %47 = arith.addf %44, %46 : vector<46x128xf32>
    %c0_46 = arith.constant 0 : index
    %c0_47 = arith.constant 0 : index
    %48 = vector.load %arg6[%c0_46, %c0_47] : memref<1x128xf32, #tpu.memory_space<vmem>>, vector<1x128xf32>
    %cst_48 = arith.constant 0.000000e+00 : f32
    %49 = vector.broadcast %cst_48 : f32 to vector<46x128xf32>
    %50 = arith.cmpf oge, %47, %49 : vector<46x128xf32>
    %51 = vector.broadcast %48 : vector<1x128xf32> to vector<46x128xf32>
    %52 = arith.mulf %51, %47 : vector<46x128xf32>
    %53 = arith.select %50, %47, %52 : vector<46x128xi1>, vector<46x128xf32>
    %54 = vector.extract_strided_slice %53 {offsets = [0, 0], sizes = [16, 128], strides = [1, 1]} : vector<46x128xf32> to vector<16x128xf32>
    %c1_49 = arith.constant 1 : index
    %c0_50 = arith.constant 0 : index
    %55 = vector.load %arg13[%c1_49, %c0_50] : memref<48x128xf32, #tpu.memory_space<vmem>>, vector<16x128xf32>
    tpu.vector_store %arg13[%c1_49, %c0_50], %54 {strides = array<i32>} : memref<48x128xf32, #tpu.memory_space<vmem>>, vector<16x128xf32>,
    %56 = vector.extract_strided_slice %53 {offsets = [24, 0], sizes = [16, 128], strides = [1, 1]} : vector<46x128xf32> to vector<16x128xf32>
    %c25_51 = arith.constant 25 : index
    %c0_52 = arith.constant 0 : index
    %57 = vector.load %arg13[%c25_51, %c0_52] : memref<48x128xf32, #tpu.memory_space<vmem>>, vector<16x128xf32>
    tpu.vector_store %arg13[%c25_51, %c0_52], %56 {strides = array<i32>} : memref<48x128xf32, #tpu.memory_space<vmem>>, vector<16x128xf32>,
    %c0_53 = arith.constant 0 : index
    %c0_54 = arith.constant 0 : index
    %58 = vector.load %arg13[%c0_53, %c0_54] : memref<48x128xf32, #tpu.memory_space<vmem>>, vector<46x128xf32>
    %59 = arith.truncf %58 : vector<46x128xf32> to vector<46x128xbf16>
    %c0_55 = arith.constant 0 : index
    %c0_56 = arith.constant 0 : index
    %c0_57 = arith.constant 0 : index
    %60 = vector.load %arg7[%c0_55, %c0_56, %c0_57] : memref<3x128x128xbf16, #tpu.memory_space<vmem>>, vector<1x128x128xbf16>
    %61 = vector.shape_cast %60 : vector<1x128x128xbf16> to vector<128x128xbf16>
    %cst_58 = arith.constant dense<0.000000e+00> : vector<46x128xf32>
    %62 = tpu.matmul %59, %61, %cst_58 {dimension_numbers = #tpu.dot_dimension_numbers<[1], [0], [0], [1], [0, 0, 1, 1], [], []>} : vector<46x128xbf16>, vector<128x128xbf16>, vector<46x128xf32> -> vector<46x128xf32>
    %c1_59 = arith.constant 1 : index
    %c0_60 = arith.constant 0 : index
    %63 = vector.load %arg13[%c1_59, %c0_60] : memref<48x128xf32, #tpu.memory_space<vmem>>, vector<46x128xf32>
    %64 = arith.truncf %63 : vector<46x128xf32> to vector<46x128xbf16>
    %c1_61 = arith.constant 1 : index
    %c0_62 = arith.constant 0 : index
    %c0_63 = arith.constant 0 : index
    %65 = vector.load %arg7[%c1_61, %c0_62, %c0_63] : memref<3x128x128xbf16, #tpu.memory_space<vmem>>, vector<1x128x128xbf16>
    %66 = vector.shape_cast %65 : vector<1x128x128xbf16> to vector<128x128xbf16>
    %cst_64 = arith.constant dense<0.000000e+00> : vector<46x128xf32>
    %67 = tpu.matmul %64, %66, %cst_64 {dimension_numbers = #tpu.dot_dimension_numbers<[1], [0], [0], [1], [0, 0, 1, 1], [], []>} : vector<46x128xbf16>, vector<128x128xbf16>, vector<46x128xf32> -> vector<46x128xf32>
    %68 = arith.addf %62, %67 : vector<46x128xf32>
    %c2_65 = arith.constant 2 : index
    %c0_66 = arith.constant 0 : index
    %69 = vector.load %arg13[%c2_65, %c0_66] : memref<48x128xf32, #tpu.memory_space<vmem>>, vector<46x128xf32>
    %70 = arith.truncf %69 : vector<46x128xf32> to vector<46x128xbf16>
    %c2_67 = arith.constant 2 : index
    %c0_68 = arith.constant 0 : index
    %c0_69 = arith.constant 0 : index
    %71 = vector.load %arg7[%c2_67, %c0_68, %c0_69] : memref<3x128x128xbf16, #tpu.memory_space<vmem>>, vector<1x128x128xbf16>
    %72 = vector.shape_cast %71 : vector<1x128x128xbf16> to vector<128x128xbf16>
    %cst_70 = arith.constant dense<0.000000e+00> : vector<46x128xf32>
    %73 = tpu.matmul %70, %72, %cst_70 {dimension_numbers = #tpu.dot_dimension_numbers<[1], [0], [0], [1], [0, 0, 1, 1], [], []>} : vector<46x128xbf16>, vector<128x128xbf16>, vector<46x128xf32> -> vector<46x128xf32>
    %74 = arith.addf %68, %73 : vector<46x128xf32>
    %c0_71 = arith.constant 0 : index
    %c0_72 = arith.constant 0 : index
    %75 = vector.load %arg8[%c0_71, %c0_72] : memref<1x128xf32, #tpu.memory_space<vmem>>, vector<1x128xf32>
    %76 = vector.broadcast %75 : vector<1x128xf32> to vector<46x128xf32>
    %77 = arith.addf %74, %76 : vector<46x128xf32>
    %c0_73 = arith.constant 0 : index
    %c0_74 = arith.constant 0 : index
    %78 = vector.load %arg9[%c0_73, %c0_74] : memref<1x128xf32, #tpu.memory_space<vmem>>, vector<1x128xf32>
    %c0_75 = arith.constant 0 : index
    %c0_76 = arith.constant 0 : index
    %79 = vector.load %arg10[%c0_75, %c0_76] : memref<1x128xf32, #tpu.memory_space<vmem>>, vector<1x128xf32>
    %cst_77 = arith.constant 0.000000e+00 : f32
    %80 = vector.broadcast %cst_77 : f32 to vector<46x128xf32>
    %81 = arith.cmpf oge, %77, %80 : vector<46x128xf32>
    %82 = vector.broadcast %78 : vector<1x128xf32> to vector<46x128xf32>
    %83 = arith.mulf %82, %77 : vector<46x128xf32>
    %84 = arith.select %81, %77, %83 : vector<46x128xi1>, vector<46x128xf32>
    %cst_78 = arith.constant 0.000000e+00 : f32
    %85 = vector.broadcast %cst_78 : f32 to vector<46x128xf32>
    %86 = arith.cmpf oge, %84, %85 : vector<46x128xf32>
    %87 = vector.broadcast %79 : vector<1x128xf32> to vector<46x128xf32>
    %88 = arith.mulf %87, %84 : vector<46x128xf32>
    %89 = arith.select %86, %84, %88 : vector<46x128xi1>, vector<46x128xf32>
    %90 = vector.extract_strided_slice %89 {offsets = [0, 0], sizes = [16, 128], strides = [1, 1]} : vector<46x128xf32> to vector<16x128xf32>
    %c0_79 = arith.constant 0 : index
    %c0_80 = arith.constant 0 : index
    %c0_81 = arith.constant 0 : index
    %91 = vector.load %arg11[%c0_79, %c0_80, %c0_81] : memref<2x16x128xf32, #tpu.memory_space<vmem>>, vector<1x16x128xf32>
    %92 = vector.shape_cast %91 : vector<1x16x128xf32> to vector<16x128xf32>
    %93 = vector.shape_cast %90 : vector<16x128xf32> to vector<1x16x128xf32>
    tpu.vector_store %arg11[%c0_79, %c0_80, %c0_81], %93 {strides = array<i32>} : memref<2x16x128xf32, #tpu.memory_space<vmem>>, vector<1x16x128xf32>,
    %94 = vector.extract_strided_slice %89 {offsets = [24, 0], sizes = [16, 128], strides = [1, 1]} : vector<46x128xf32> to vector<16x128xf32>
    %c1_82 = arith.constant 1 : index
    %c0_83 = arith.constant 0 : index
    %c0_84 = arith.constant 0 : index
    %95 = vector.load %arg11[%c1_82, %c0_83, %c0_84] : memref<2x16x128xf32, #tpu.memory_space<vmem>>, vector<1x16x128xf32>
    %96 = vector.shape_cast %95 : vector<1x16x128xf32> to vector<16x128xf32>
    %97 = vector.shape_cast %94 : vector<16x128xf32> to vector<1x16x128xf32>
    tpu.vector_store %arg11[%c1_82, %c0_83, %c0_84], %97 {strides = array<i32>} : memref<2x16x128xf32, #tpu.memory_space<vmem>>, vector<1x16x128xf32>,
    return
  }
  func.func @transform_0(%arg0: i32) -> (i32, i32, i32) {
    %c0_i32 = arith.constant 0 : i32
    %c0_i32_0 = arith.constant 0 : i32
    %c0_i32_1 = arith.constant 0 : i32
    return %arg0, %c0_i32, %c0_i32_0 : i32, i32, i32
  }
  func.func @transform_1(%arg0: i32) -> (i32, i32) {
    %c0_i32 = arith.constant 0 : i32
    %c0_i32_0 = arith.constant 0 : i32
    %c0_i32_1 = arith.constant 0 : i32
    return %c0_i32, %c0_i32_0 : i32, i32
  }
  func.func @transform_2(%arg0: i32) -> (i32, i32) {
    %c0_i32 = arith.constant 0 : i32
    %c0_i32_0 = arith.constant 0 : i32
    %c0_i32_1 = arith.constant 0 : i32
    return %c0_i32, %c0_i32_0 : i32, i32
  }
  func.func @transform_3(%arg0: i32) -> (i32, i32, i32) {
    %c0_i32 = arith.constant 0 : i32
    %c0_i32_0 = arith.constant 0 : i32
    %c0_i32_1 = arith.constant 0 : i32
    %c0_i32_2 = arith.constant 0 : i32
    return %c0_i32, %c0_i32_0, %c0_i32_1 : i32, i32, i32
  }
  func.func @transform_4(%arg0: i32) -> (i32, i32) {
    %c0_i32 = arith.constant 0 : i32
    %c0_i32_0 = arith.constant 0 : i32
    %c0_i32_1 = arith.constant 0 : i32
    return %c0_i32, %c0_i32_0 : i32, i32
  }
  func.func @transform_5(%arg0: i32) -> (i32, i32) {
    %c0_i32 = arith.constant 0 : i32
    %c0_i32_0 = arith.constant 0 : i32
    %c0_i32_1 = arith.constant 0 : i32
    return %c0_i32, %c0_i32_0 : i32, i32
  }
  func.func @transform_6(%arg0: i32) -> (i32, i32, i32) {
    %c0_i32 = arith.constant 0 : i32
    %c0_i32_0 = arith.constant 0 : i32
    %c0_i32_1 = arith.constant 0 : i32
    %c0_i32_2 = arith.constant 0 : i32
    return %c0_i32, %c0_i32_0, %c0_i32_1 : i32, i32, i32
  }
  func.func @transform_7(%arg0: i32) -> (i32, i32) {
    %c0_i32 = arith.constant 0 : i32
    %c0_i32_0 = arith.constant 0 : i32
    %c0_i32_1 = arith.constant 0 : i32
    return %c0_i32, %c0_i32_0 : i32, i32
  }
  func.func @transform_8(%arg0: i32) -> (i32, i32) {
    %c0_i32 = arith.constant 0 : i32
    %c0_i32_0 = arith.constant 0 : i32
    %c0_i32_1 = arith.constant 0 : i32
    return %c0_i32, %c0_i32_0 : i32, i32
  }
  func.func @transform_9(%arg0: i32) -> (i32, i32) {
    %c0_i32 = arith.constant 0 : i32
    %c0_i32_0 = arith.constant 0 : i32
    %c0_i32_1 = arith.constant 0 : i32
    return %c0_i32, %c0_i32_0 : i32, i32
  }
  func.func @transform_10(%arg0: i32) -> (i32, i32, i32) {
    %c0_i32 = arith.constant 0 : i32
    %c0_i32_0 = arith.constant 0 : i32
    %c0_i32_1 = arith.constant 0 : i32
    return %arg0, %c0_i32, %c0_i32_0 : i32, i32, i32
  }
}

</mosaic_0001>

<llo_original>
// kernel: tpu_custom_call.1
$region0: #{tpu_custom_call.1}
  #allocation0 [shape = 'u32[]', space=smem, size = 0x4, offset = 0x4, fixed_abs, tag = 'smem constant byte address 0x4 - core index']
  #allocation1 [shape = 'u32[144,128]{1,0:T(1,128)}', space=vmem, size = 0x12000, scoped, tag = 'internal scratch']
  #allocation2 [shape = 'f32[48,128]{1,0:T(8,128)}', space=vmem, size = 0x6000, scoped, tag = 'scratch operand']
  #allocation3 [shape = 'f32[48,128]{1,0:T(8,128)}', space=vmem, size = 0x6000, scoped, tag = 'scratch operand']
  %s0 = inlined_call_operand.hbm [shape: f32[4,16,128], index: 0, kind: input, shape index: {}]
  %s1 = inlined_call_operand.vmem [shape: f32[1,128], index: 1, kind: input, shape index: {}]
  %s2 = inlined_call_operand.vmem [shape: f32[1,128], index: 2, kind: input, shape index: {}]
  %s3 = inlined_call_operand.hbm [shape: bf16[3,128,128], index: 3, kind: input, shape index: {}]
  %s4 = inlined_call_operand.vmem [shape: f32[1,128], index: 4, kind: input, shape index: {}]
  %s5 = inlined_call_operand.vmem [shape: f32[1,128], index: 5, kind: input, shape index: {}]
  %s6 = inlined_call_operand.hbm [shape: bf16[3,128,128], index: 6, kind: input, shape index: {}]
  %s7 = inlined_call_operand.vmem [shape: f32[1,128], index: 7, kind: input, shape index: {}]
  %s8 = inlined_call_operand.vmem [shape: f32[1,128], index: 8, kind: input, shape index: {}]
  %s9 = inlined_call_operand.vmem [shape: f32[1,128], index: 9, kind: input, shape index: {}]
  %s10 = inlined_call_operand.hbm [shape: f32[4,16,128], index: 10, kind: output, shape index: {}]
  %s11 = sld [smem:[#allocation0]]
  $region85: #{tpu_custom_call.1} parent=0
    _
  %s13 = ssub.s32 1, %s11
  %s14 = scalar_select 0, %s13, %s11
  $region1: #{tpu_custom_call.1} parent=0
    #allocation4 [shape = 'u8[32768]{0}', space=vmem, size = 0x8000, scoped, tag = 'input window, operand 0']
    #allocation5 [shape = 's32[2]{0}', space=sflag, size = 0x8, scoped, tag = 'scoped memory for tpu_custom_call.1']
    #allocation6 [shape = 's32[2]{0}', space=sflag, size = 0x8, scoped, tag = 'scoped memory for tpu_custom_call.1']
    #allocation7 [shape = 'u8[98304]{0}', space=vmem, size = 0x18000, scoped, tag = 'input window, operand 3, single buffered']
    #allocation8 [shape = 's32[1]{0}', space=sflag, size = 0x4, scoped, tag = 'scoped memory for tpu_custom_call.1']
    #allocation9 [shape = 'u8[98304]{0}', space=vmem, size = 0x18000, scoped, tag = 'input window, operand 6, single buffered']
    #allocation10 [shape = 'u8[32768]{0}', space=vmem, size = 0x8000, scoped, tag = 'output window, operand 0']
    %15 = vsyncpa [#allocation5], 0
    %s16 = scalar_lea.sflag [#allocation5], 1
    %17 = vsyncpa %s16, 0
    %18 = vsyncpa [#allocation8], 0
    %19 = vsyncpa [#allocation6], 0
    %s20 = scalar_lea.sflag [#allocation6], 1
    %21 = vsyncpa %s20, 0
    loop: start=0, step=1, limit=4
    $region2: #{tpu_custom_call.1} parent=1 // loop_pre_header
      _
    $region3: #{tpu_custom_call.1} parent=1 // loop_header
      %s23 = sphi 0, %s27
      %p24 = scmp.ge.s32.totalorder %s23, 4
      %s33 = sphi 0, %s35
      %s36 = sphi 0, %s33
      %s37 = sphi 0, %s36
      %s53 = sphi 0, %s37
      %s57 = sphi 0, %s57
      %s59 = sphi 0, %s57
      %s60 = sphi 0, %s59
      %s74 = sphi 0, %s60
      %s78 = sphi 0, %s78
      %s80 = sphi 0, %s78
      %s81 = sphi 0, %s80
      %s95 = sphi 0, %s81
      %s99 = sphi 0, %s99
      %s101 = sphi 0, %s99
      %s102 = sphi 0, %s101
      %s116 = sphi 0, %s102
      %s120 = sphi 0, %s120
      %s122 = sphi 0, %s120
      %s123 = sphi 0, %s122
      %s137 = sphi 0, %s123
      %s141 = sphi 0, %s141
      %s143 = sphi 0, %s141
      %s144 = sphi 0, %s143
      %s158 = sphi 0, %s144
      %s162 = sphi 0, %s162
      %s164 = sphi 0, %s162
      %s165 = sphi 0, %s164
      %s179 = sphi 0, %s165
      %s183 = sphi 0, %s183
      %s185 = sphi 0, %s183
      %s186 = sphi 0, %s185
      %s200 = sphi 0, %s186
      %s204 = sphi 0, %s204
      %s206 = sphi 0, %s204
      %s207 = sphi 0, %s206
      %s221 = sphi 0, %s207
      %s225 = sphi 0, %s225
      %s227 = sphi 0, %s225
      %s228 = sphi 0, %s227
      %s242 = sphi 0, %s228
      %s248 = sphi 0, %s250
      %s251 = sphi 0, %s248
      %s252 = sphi 0, %s251
      %s268 = sphi 0, %s252
    $region4: #{tpu_custom_call.1} parent=1 // loop_header_branch
      %26 = sbr.rel (%p24) target = $region8
    $region5: #{tpu_custom_call.1} parent=1 // loop_body
      %s28 = ssub.s32 %s23, 1
      %s29 = ssub.s32 %s23, 2
      %s30 = sadd.s32 %s23, 1
      %s31 = ssub.s32 %s23, %s30
      %p32 = scmp.eq.s32.totalorder %s31, 0
      %s34 = sadd.s32 %s33, 1
      %s35 = scalar_select %p32, %s33, %s34
      %p38 = pneg %p32
      %p39 = scmp.eq.s32.totalorder %s23, 1
      %p40 = por %p38, %p39
      %p41 = scmp.ne.s32.totalorder %s33, %s36
      %p42 = scmp.eq.s32.totalorder %s23, 0
      %p43 = por %p41, %p42
      %p44 = scmp.ne.s32.totalorder %s33, %s36
      %p45 = scmp.eq.s32.totalorder %s28, 1
      %p46 = por %p44, %p45
      %p47 = scmp.ne.s32.totalorder %s36, %s37
      %p48 = scmp.eq.s32.totalorder %s28, 0
      %p49 = por %p47, %p48
      %p50 = scmp.ne.s32.totalorder %s36, %s37
      %p51 = scmp.eq.s32.totalorder %s29, 1
      %p52 = por %p50, %p51
      %p54 = scmp.ne.s32.totalorder %s37, %s53
      %p55 = scmp.eq.s32.totalorder %s29, 0
      %p56 = por %p54, %p55
      %s58 = sadd.s32 %s57, 1
      %p61 = scmp.eq.s32.totalorder %s23, 1
      %p62 = scmp.ne.s32.totalorder %s57, %s59
      %p63 = scmp.eq.s32.totalorder %s23, 0
      %p64 = por %p62, %p63
      %p65 = scmp.ne.s32.totalorder %s57, %s59
      %p66 = scmp.eq.s32.totalorder %s28, 1
      %p67 = por %p65, %p66
      %p68 = scmp.ne.s32.totalorder %s59, %s60
      %p69 = scmp.eq.s32.totalorder %s28, 0
      %p70 = por %p68, %p69
      %p71 = scmp.ne.s32.totalorder %s59, %s60
      %p72 = scmp.eq.s32.totalorder %s29, 1
      %p73 = por %p71, %p72
      %p75 = scmp.ne.s32.totalorder %s60, %s74
      %p76 = scmp.eq.s32.totalorder %s29, 0
      %p77 = por %p75, %p76
      %s79 = sadd.s32 %s78, 1
      %p82 = scmp.eq.s32.totalorder %s23, 1
      %p83 = scmp.ne.s32.totalorder %s78, %s80
      %p84 = scmp.eq.s32.totalorder %s23, 0
      %p85 = por %p83, %p84
      %p86 = scmp.ne.s32.totalorder %s78, %s80
      %p87 = scmp.eq.s32.totalorder %s28, 1
      %p88 = por %p86, %p87
      %p89 = scmp.ne.s32.totalorder %s80, %s81
      %p90 = scmp.eq.s32.totalorder %s28, 0
      %p91 = por %p89, %p90
      %p92 = scmp.ne.s32.totalorder %s80, %s81
      %p93 = scmp.eq.s32.totalorder %s29, 1
      %p94 = por %p92, %p93
      %p96 = scmp.ne.s32.totalorder %s81, %s95
      %p97 = scmp.eq.s32.totalorder %s29, 0
      %p98 = por %p96, %p97
      %s100 = sadd.s32 %s99, 1
      %p103 = scmp.eq.s32.totalorder %s23, 1
      %p104 = scmp.ne.s32.totalorder %s99, %s101
      %p105 = scmp.eq.s32.totalorder %s23, 0
      %p106 = por %p104, %p105
      %p107 = scmp.ne.s32.totalorder %s99, %s101
      %p108 = scmp.eq.s32.totalorder %s28, 1
      %p109 = por %p107, %p108
      %p110 = scmp.ne.s32.totalorder %s101, %s102
      %p111 = scmp.eq.s32.totalorder %s28, 0
      %p112 = por %p110, %p111
      %p113 = scmp.ne.s32.totalorder %s101, %s102
      %p114 = scmp.eq.s32.totalorder %s29, 1
      %p115 = por %p113, %p114
      %p117 = scmp.ne.s32.totalorder %s102, %s116
      %p118 = scmp.eq.s32.totalorder %s29, 0
      %p119 = por %p117, %p118
      %s121 = sadd.s32 %s120, 1
      %p124 = scmp.eq.s32.totalorder %s23, 1
      %p125 = scmp.ne.s32.totalorder %s120, %s122
      %p126 = scmp.eq.s32.totalorder %s23, 0
      %p127 = por %p125, %p126
      %p128 = scmp.ne.s32.totalorder %s120, %s122
      %p129 = scmp.eq.s32.totalorder %s28, 1
      %p130 = por %p128, %p129
      %p131 = scmp.ne.s32.totalorder %s122, %s123
      %p132 = scmp.eq.s32.totalorder %s28, 0
      %p133 = por %p131, %p132
      %p134 = scmp.ne.s32.totalorder %s122, %s123
      %p135 = scmp.eq.s32.totalorder %s29, 1
      %p136 = por %p134, %p135
      %p138 = scmp.ne.s32.totalorder %s123, %s137
      %p139 = scmp.eq.s32.totalorder %s29, 0
      %p140 = por %p138, %p139
      %s142 = sadd.s32 %s141, 1
      %p145 = scmp.eq.s32.totalorder %s23, 1
      %p146 = scmp.ne.s32.totalorder %s141, %s143
      %p147 = scmp.eq.s32.totalorder %s23, 0
      %p148 = por %p146, %p147
      %p149 = scmp.ne.s32.totalorder %s141, %s143
      %p150 = scmp.eq.s32.totalorder %s28, 1
      %p151 = por %p149, %p150
      %p152 = scmp.ne.s32.totalorder %s143, %s144
      %p153 = scmp.eq.s32.totalorder %s28, 0
      %p154 = por %p152, %p153
      %p155 = scmp.ne.s32.totalorder %s143, %s144
      %p156 = scmp.eq.s32.totalorder %s29, 1
      %p157 = por %p155, %p156
      %p159 = scmp.ne.s32.totalorder %s144, %s158
      %p160 = scmp.eq.s32.totalorder %s29, 0
      %p161 = por %p159, %p160
      %s163 = sadd.s32 %s162, 1
      %p166 = scmp.eq.s32.totalorder %s23, 1
      %p167 = scmp.ne.s32.totalorder %s162, %s164
      %p168 = scmp.eq.s32.totalorder %s23, 0
      %p169 = por %p167, %p168
      %p170 = scmp.ne.s32.totalorder %s162, %s164
      %p171 = scmp.eq.s32.totalorder %s28, 1
      %p172 = por %p170, %p171
      %p173 = scmp.ne.s32.totalorder %s164, %s165
      %p174 = scmp.eq.s32.totalorder %s28, 0
      %p175 = por %p173, %p174
      %p176 = scmp.ne.s32.totalorder %s164, %s165
      %p177 = scmp.eq.s32.totalorder %s29, 1
      %p178 = por %p176, %p177
      %p180 = scmp.ne.s32.totalorder %s165, %s179
      %p181 = scmp.eq.s32.totalorder %s29, 0
      %p182 = por %p180, %p181
      %s184 = sadd.s32 %s183, 1
      %p187 = scmp.eq.s32.totalorder %s23, 1
      %p188 = scmp.ne.s32.totalorder %s183, %s185
      %p189 = scmp.eq.s32.totalorder %s23, 0
      %p190 = por %p188, %p189
      %p191 = scmp.ne.s32.totalorder %s183, %s185
      %p192 = scmp.eq.s32.totalorder %s28, 1
      %p193 = por %p191, %p192
      %p194 = scmp.ne.s32.totalorder %s185, %s186
      %p195 = scmp.eq.s32.totalorder %s28, 0
      %p196 = por %p194, %p195
      %p197 = scmp.ne.s32.totalorder %s185, %s186
      %p198 = scmp.eq.s32.totalorder %s29, 1
      %p199 = por %p197, %p198
      %p201 = scmp.ne.s32.totalorder %s186, %s200
      %p202 = scmp.eq.s32.totalorder %s29, 0
      %p203 = por %p201, %p202
      %s205 = sadd.s32 %s204, 1
      %p208 = scmp.eq.s32.totalorder %s23, 1
      %p209 = scmp.ne.s32.totalorder %s204, %s206
      %p210 = scmp.eq.s32.totalorder %s23, 0
      %p211 = por %p209, %p210
      %p212 = scmp.ne.s32.totalorder %s204, %s206
      %p213 = scmp.eq.s32.totalorder %s28, 1
      %p214 = por %p212, %p213
      %p215 = scmp.ne.s32.totalorder %s206, %s207
      %p216 = scmp.eq.s32.totalorder %s28, 0
      %p217 = por %p215, %p216
      %p218 = scmp.ne.s32.totalorder %s206, %s207
      %p219 = scmp.eq.s32.totalorder %s29, 1
      %p220 = por %p218, %p219
      %p222 = scmp.ne.s32.totalorder %s207, %s221
      %p223 = scmp.eq.s32.totalorder %s29, 0
      %p224 = por %p222, %p223
      %s226 = sadd.s32 %s225, 1
      %p229 = scmp.eq.s32.totalorder %s23, 1
      %p230 = scmp.ne.s32.totalorder %s225, %s227
      %p231 = scmp.eq.s32.totalorder %s23, 0
      %p232 = por %p230, %p231
      %p233 = scmp.ne.s32.totalorder %s225, %s227
      %p234 = scmp.eq.s32.totalorder %s28, 1
      %p235 = por %p233, %p234
      %p236 = scmp.ne.s32.totalorder %s227, %s228
      %p237 = scmp.eq.s32.totalorder %s28, 0
      %p238 = por %p236, %p237
      %p239 = scmp.ne.s32.totalorder %s227, %s228
      %p240 = scmp.eq.s32.totalorder %s29, 1
      %p241 = por %p239, %p240
      %p243 = scmp.ne.s32.totalorder %s228, %s242
      %p244 = scmp.eq.s32.totalorder %s29, 0
      %p245 = por %p243, %p244
      %s246 = ssub.s32 %s23, %s30
      %p247 = scmp.eq.s32.totalorder %s246, 0
      %s249 = sadd.s32 %s248, 1
      %s250 = scalar_select %p247, %s248, %s249
      %p253 = pneg %p247
      %p254 = scmp.eq.s32.totalorder %s23, 1
      %p255 = por %p253, %p254
      %p256 = scmp.ne.s32.totalorder %s248, %s251
      %p257 = scmp.eq.s32.totalorder %s23, 0
      %p258 = por %p256, %p257
      %p259 = scmp.ne.s32.totalorder %s248, %s251
      %p260 = scmp.eq.s32.totalorder %s28, 1
      %p261 = por %p259, %p260
      %p262 = scmp.ne.s32.totalorder %s251, %s252
      %p263 = scmp.eq.s32.totalorder %s28, 0
      %p264 = por %p262, %p263
      %p265 = scmp.ne.s32.totalorder %s251, %s252
      %p266 = scmp.eq.s32.totalorder %s29, 1
      %p267 = por %p265, %p266
      %p269 = scmp.ne.s32.totalorder %s252, %s268
      %p270 = scmp.eq.s32.totalorder %s29, 0
      %p271 = por %p269, %p270
      %p272 = scmp.le.s32.totalorder 1, %s23
      %p273 = scmp.lt.s32.totalorder %s23, 3
      %p274 = pnand %p272, %p273
      %p275 = pneg %p274
      // Predicated region
      $region9: #{tpu_custom_call.1} parent=5 // pred_check
        _
      $region10: #{tpu_custom_call.1} parent=5 // pred_check_branch
        %277 = sbr.rel (%p274) target = $region12
      $region11: #{tpu_custom_call.1} parent=5 // pred_region
        %s278 = ssub.s32 %s23, 1
        // Predicated region
        $region13: #{tpu_custom_call.1} parent=11 // pred_check
          %p279 = pneg %p70
        $region14: #{tpu_custom_call.1} parent=11 // pred_check_branch
          %281 = sbr.rel (%p279) target = $region16
        $region15: #{tpu_custom_call.1} parent=11 // pred_region
          _
        $region16: #{tpu_custom_call.1} parent=11 // pred_fallthru
          _
        // Predicated region
        $region17: #{tpu_custom_call.1} parent=11 // pred_check
          %p282 = pneg %p91
        $region18: #{tpu_custom_call.1} parent=11 // pred_check_branch
          %284 = sbr.rel (%p282) target = $region20
        $region19: #{tpu_custom_call.1} parent=11 // pred_region
          _
        $region20: #{tpu_custom_call.1} parent=11 // pred_fallthru
          _
        // Predicated region
        $region21: #{tpu_custom_call.1} parent=11 // pred_check
          %p285 = pneg %p112
        $region22: #{tpu_custom_call.1} parent=11 // pred_check_branch
          %287 = sbr.rel (%p285) target = $region24
        $region23: #{tpu_custom_call.1} parent=11 // pred_region
          %s289 = ssub.s32 3072, 3072
          %290 = vsyncadd [#allocation8], %s289
          %s291 = sshll.u32 [#allocation7], 4
          %s292 = int_to_ptr.vmem [resolvable:$true] %s291
          %297 = dma.hbm_to_vmem [thread:$0]  %s3, 3072, %s292, [#allocation8], 64, 64, 4
        $region24: #{tpu_custom_call.1} parent=11 // pred_fallthru
          _
        // Predicated region
        $region25: #{tpu_custom_call.1} parent=11 // pred_check
          %p298 = pneg %p133
        $region26: #{tpu_custom_call.1} parent=11 // pred_check_branch
          %300 = sbr.rel (%p298) target = $region28
        $region27: #{tpu_custom_call.1} parent=11 // pred_region
          _
        $region28: #{tpu_custom_call.1} parent=11 // pred_fallthru
          _
        // Predicated region
        $region29: #{tpu_custom_call.1} parent=11 // pred_check
          %p301 = pneg %p154
        $region30: #{tpu_custom_call.1} parent=11 // pred_check_branch
          %303 = sbr.rel (%p301) target = $region32
        $region31: #{tpu_custom_call.1} parent=11 // pred_region
          _
        $region32: #{tpu_custom_call.1} parent=11 // pred_fallthru
          _
        // Predicated region
        $region33: #{tpu_custom_call.1} parent=11 // pred_check
          %p304 = pneg %p175
        $region34: #{tpu_custom_call.1} parent=11 // pred_check_branch
          %306 = sbr.rel (%p304) target = $region36
        $region35: #{tpu_custom_call.1} parent=11 // pred_region
          %s308 = ssub.s32 3072, 3072
          %309 = vsyncadd [#allocation8], %s308
          %s310 = sshll.u32 [#allocation9], 4
          %s311 = int_to_ptr.vmem [resolvable:$true] %s310
          %316 = dma.hbm_to_vmem [thread:$0]  %s6, 3072, %s311, [#allocation8], 64, 64, 4
        $region36: #{tpu_custom_call.1} parent=11 // pred_fallthru
          _
        // Predicated region
        $region37: #{tpu_custom_call.1} parent=11 // pred_check
          %p317 = pneg %p196
        $region38: #{tpu_custom_call.1} parent=11 // pred_check_branch
          %319 = sbr.rel (%p317) target = $region40
        $region39: #{tpu_custom_call.1} parent=11 // pred_region
          _
        $region40: #{tpu_custom_call.1} parent=11 // pred_fallthru
          _
        // Predicated region
        $region41: #{tpu_custom_call.1} parent=11 // pred_check
          %p320 = pneg %p217
        $region42: #{tpu_custom_call.1} parent=11 // pred_check_branch
          %322 = sbr.rel (%p320) target = $region44
        $region43: #{tpu_custom_call.1} parent=11 // pred_region
          _
        $region44: #{tpu_custom_call.1} parent=11 // pred_fallthru
          _
        // Predicated region
        $region45: #{tpu_custom_call.1} parent=11 // pred_check
          %p323 = pneg %p238
        $region46: #{tpu_custom_call.1} parent=11 // pred_check_branch
          %325 = sbr.rel (%p323) target = $region48
        $region47: #{tpu_custom_call.1} parent=11 // pred_region
          _
        $region48: #{tpu_custom_call.1} parent=11 // pred_fallthru
          _
      $region12: #{tpu_custom_call.1} parent=5 // pred_fallthru
        _
      %p326 = scmp.lt.s32.totalorder %s23, 2
      // Predicated region
      $region49: #{tpu_custom_call.1} parent=5 // pred_check
        %p327 = pneg %p326
      $region50: #{tpu_custom_call.1} parent=5 // pred_check_branch
        %329 = sbr.rel (%p327) target = $region52
      $region51: #{tpu_custom_call.1} parent=5 // pred_region
        // Predicated region
        $region53: #{tpu_custom_call.1} parent=51 // pred_check
          %p330 = pneg %p43
        $region54: #{tpu_custom_call.1} parent=51 // pred_check_branch
          %332 = sbr.rel (%p330) target = $region56
        $region55: #{tpu_custom_call.1} parent=51 // pred_region
          %s333 = sand.u32 %s33, 1
          %s334 = scalar_lea.sflag [#allocation5], %s333
          %s335 = sand.u32 %s33, 1
          %s336 = smul.addr %s335, 32
          %s337 = scalar_lea.vmem [#allocation4], %s336
          %s338 = smul.u32 2, %s23
          %s340 = ssub.s32 512, 512
          %341 = vsyncadd %s334, %s340
          %s342 = smul.addr %s338, 2
          %s343 = smul.addr %s342, 128
          %s344 = scalar_lea.hbm %s0, %s343
          %s345 = sshll.u32 %s337, 4
          %s346 = int_to_ptr.vmem [resolvable:$true] %s345
          %351 = dma.hbm_to_vmem [thread:$0]  %s344, 512, %s346, %s334, 128, 128, 8
        $region56: #{tpu_custom_call.1} parent=51 // pred_fallthru
          _
      $region52: #{tpu_custom_call.1} parent=5 // pred_fallthru
        _
      %p352 = scmp.le.s32.totalorder 1, %s23
      %p353 = scmp.lt.s32.totalorder %s23, 3
      %p354 = pnand %p352, %p353
      %p355 = pneg %p354
      // Predicated region
      $region57: #{tpu_custom_call.1} parent=5 // pred_check
        _
      $region58: #{tpu_custom_call.1} parent=5 // pred_check_branch
        %357 = sbr.rel (%p354) target = $region60
      $region59: #{tpu_custom_call.1} parent=5 // pred_region
        %s358 = ssub.s32 %s23, 1
        %s359 = sand.u32 %s36, 1
        %s360 = scalar_lea.sflag [#allocation5], %s359
        %s361 = sand.u32 %s36, 1
        %s362 = smul.addr %s361, 32
        %s363 = scalar_lea.vmem [#allocation4], %s362
        // Predicated region
        $region61: #{tpu_custom_call.1} parent=59 // pred_check
          %p364 = pneg %p49
        $region62: #{tpu_custom_call.1} parent=59 // pred_check_branch
          %366 = sbr.rel (%p364) target = $region64
        $region63: #{tpu_custom_call.1} parent=59 // pred_region
          %367 = dma.done %s360, 512
        $region64: #{tpu_custom_call.1} parent=59 // pred_fallthru
          _
        // Predicated region
        $region65: #{tpu_custom_call.1} parent=59 // pred_check
          %p368 = pneg %p112
        $region66: #{tpu_custom_call.1} parent=59 // pred_check_branch
          %370 = sbr.rel (%p368) target = $region68
        $region67: #{tpu_custom_call.1} parent=59 // pred_region
          %371 = dma.done [#allocation8], 3072
        $region68: #{tpu_custom_call.1} parent=59 // pred_fallthru
          _
        // Predicated region
        $region69: #{tpu_custom_call.1} parent=59 // pred_check
          %p372 = pneg %p175
        $region70: #{tpu_custom_call.1} parent=59 // pred_check_branch
          %374 = sbr.rel (%p372) target = $region72
        $region71: #{tpu_custom_call.1} parent=59 // pred_region
          %375 = dma.done [#allocation8], 3072
        $region72: #{tpu_custom_call.1} parent=59 // pred_fallthru
          _
        %s376 = sand.u32 %s36, 1
        %s377 = scalar_lea.sflag [#allocation5], %s376
        %s378 = sand.u32 %s36, 1
        %s379 = smul.addr %s378, 32
        %s380 = scalar_lea.vmem [#allocation4], %s379
        %p381 = pneg %p49
        %p382 = pneg %p46
        %p383 = pneg %p70
        %p384 = pneg %p67
        %p385 = pneg %p91
        %p386 = pneg %p88
        %p387 = pneg %p112
        %p388 = pneg %p109
        %p389 = pneg %p133
        %p390 = pneg %p130
        %p391 = pneg %p154
        %p392 = pneg %p151
        %p393 = pneg %p175
        %p394 = pneg %p172
        %p395 = pneg %p196
        %p396 = pneg %p193
        %p397 = pneg %p217
        %p398 = pneg %p214
        %p399 = pneg %p238
        %p400 = pneg %p235
        %p401 = pneg %p264
        %p402 = pneg %p261
        %s403 = sand.u32 %s251, 1
        %s404 = scalar_lea.sflag [#allocation6], %s403
        %s405 = sand.u32 %s251, 1
        %s406 = smul.addr %s405, 32
        %s407 = scalar_lea.vmem [#allocation10], %s406
        %s408 = smul.u32 2, %s28
        %s409 = smul.u32 2, %s28
        %v411 = vld [vmem:[%s1] sm:$0x1]
        %v412 = vld [vmem:[%s2] sm:$0x1]
        %413 = vst [vmem:[#allocation2] sm:$0x1] 0.0
        %414 = vst [vmem:[#allocation2 + $0x11] sm:$0x7f] 0.0
        %415 = vst [vmem:[#allocation3] sm:$0x1] 0.0
        %416 = vst [vmem:[#allocation3 + $0x11] sm:$0x7f] 0.0
        %v417 = vld [vmem:[%s363] sm:$0xff]
        %v418 = vld [vmem:[%s363 + $0x8] sm:$0xff]
        %v420 = vlaneseq
        %v421 = vshrl.u32 %v420, 7
        %v422 = vsub.s32 0, %v421
        %v423 = vrot.slane %v411, %v422
        %v425 = vmul.f32 %v417, %v423
        %v426 = vmul.f32 %v418, %v423
        %v428 = vlaneseq
        %v429 = vshrl.u32 %v428, 7
        %v430 = vsub.s32 0, %v429
        %v431 = vrot.slane %v412, %v430
        %v433 = vadd.f32 %v425, %v431
        %v434 = vadd.f32 %v426, %v431
        %435 = vst [vmem:[#allocation2 + $0x1] sm:$0xff] %v433
        %436 = vst [vmem:[#allocation2 + $0x9] sm:$0xff] %v434
        %437 = vst [vmem:[#allocation2 + $0x18] sm:$0x1] 0.0
        %438 = vst [vmem:[#allocation2 + $0x29] sm:$0x7f] 0.0
        %439 = vst [vmem:[#allocation3 + $0x18] sm:$0x1] 0.0
        %440 = vst [vmem:[#allocation3 + $0x29] sm:$0x7f] 0.0
        %s441 = scalar_lea.vmem %s363, 16 [#allocation4]
        %v442 = vld [vmem:[%s441] sm:$0xff]
        %v443 = vld [vmem:[%s441 + $0x8] sm:$0xff]
        %v444 = vmul.f32 %v442, %v423
        %v445 = vmul.f32 %v443, %v423
        %v446 = vadd.f32 %v444, %v431
        %v447 = vadd.f32 %v445, %v431
        %448 = vst [vmem:[#allocation2 + $0x19] sm:$0xff] %v446
        %449 = vst [vmem:[#allocation2 + $0x21] sm:$0xff] %v447
        %v450 = vld [vmem:[#allocation2] sm:$0xff]
        %v451 = vld [vmem:[#allocation2 + $0x8] sm:$0xff]
        %v452 = vld [vmem:[#allocation2 + $0x10] sm:$0xff]
        %v453 = vld [vmem:[#allocation2 + $0x18] sm:$0xff]
        %v454 = vld [vmem:[#allocation2 + $0x20] sm:$0xff]
        %v455 = vld [vmem:[#allocation2 + $0x28] sm:$0x3f]
        %v456 = vpack.c.bf16 %v451, %v450
        %v457 = vpack.c.bf16 %v453, %v452
        %v458 = vpack.c.bf16 %v455, %v454
        %v459 = vld [vmem:[#allocation7] sm:$0xf]
        %v460 = vld [vmem:[#allocation7 + $0x4] sm:$0xf]
        %v461 = vld [vmem:[#allocation7 + $0x8] sm:$0xf]
        %v462 = vld [vmem:[#allocation7 + $0xc] sm:$0xf]
        %v463 = vld [vmem:[#allocation7 + $0x10] sm:$0xf]
        %v464 = vld [vmem:[#allocation7 + $0x14] sm:$0xf]
        %v465 = vld [vmem:[#allocation7 + $0x18] sm:$0xf]
        %v466 = vld [vmem:[#allocation7 + $0x1c] sm:$0xf]
        %v467 = vld [vmem:[#allocation7 + $0x20] sm:$0xf]
        %v468 = vld [vmem:[#allocation7 + $0x24] sm:$0xf]
        %v469 = vld [vmem:[#allocation7 + $0x28] sm:$0xf]
        %v470 = vld [vmem:[#allocation7 + $0x2c] sm:$0xf]
        %v471 = vld [vmem:[#allocation7 + $0x30] sm:$0xf]
        %v472 = vld [vmem:[#allocation7 + $0x34] sm:$0xf]
        %v473 = vld [vmem:[#allocation7 + $0x38] sm:$0xf]
        %v474 = vld [vmem:[#allocation7 + $0x3c] sm:$0xf]
        %v475 = vld [vmem:[#allocation2 + $0x1] sm:$0xff]
        %v476 = vld [vmem:[#allocation2 + $0x9] sm:$0xff]
        %v477 = vld [vmem:[#allocation2 + $0x11] sm:$0xff]
        %v478 = vld [vmem:[#allocation2 + $0x19] sm:$0xff]
        %v479 = vld [vmem:[#allocation2 + $0x21] sm:$0xff]
        %v480 = vld [vmem:[#allocation2 + $0x29] sm:$0x3f]
        %v481 = vpack.c.bf16 %v476, %v475
        %v482 = vpack.c.bf16 %v478, %v477
        %v483 = vpack.c.bf16 %v480, %v479
        %s484 = scalar_lea.vmem [#allocation7], 64
        %v485 = vld [vmem:[%s484] sm:$0xf]
        %v486 = vld [vmem:[%s484 + $0x4] sm:$0xf]
        %v487 = vld [vmem:[%s484 + $0x8] sm:$0xf]
        %v488 = vld [vmem:[%s484 + $0xc] sm:$0xf]
        %v489 = vld [vmem:[%s484 + $0x10] sm:$0xf]
        %v490 = vld [vmem:[%s484 + $0x14] sm:$0xf]
        %v491 = vld [vmem:[%s484 + $0x18] sm:$0xf]
        %v492 = vld [vmem:[%s484 + $0x1c] sm:$0xf]
        %v493 = vld [vmem:[%s484 + $0x20] sm:$0xf]
        %v494 = vld [vmem:[%s484 + $0x24] sm:$0xf]
        %v495 = vld [vmem:[%s484 + $0x28] sm:$0xf]
        %v496 = vld [vmem:[%s484 + $0x2c] sm:$0xf]
        %v497 = vld [vmem:[%s484 + $0x30] sm:$0xf]
        %v498 = vld [vmem:[%s484 + $0x34] sm:$0xf]
        %v499 = vld [vmem:[%s484 + $0x38] sm:$0xf]
        %v500 = vld [vmem:[%s484 + $0x3c] sm:$0xf]
        %v517 = vunpack.c.l.b16 %v485
        %v518 = vunpack.c.l.b16 %v486
        %v519 = vunpack.c.l.b16 %v487
        %v520 = vunpack.c.l.b16 %v488
        %v521 = vunpack.c.l.b16 %v489
        %v522 = vunpack.c.l.b16 %v490
        %v523 = vunpack.c.l.b16 %v491
        %v524 = vunpack.c.l.b16 %v492
        %v525 = vunpack.c.l.b16 %v493
        %v526 = vunpack.c.l.b16 %v494
        %v527 = vunpack.c.l.b16 %v495
        %v528 = vunpack.c.l.b16 %v496
        %v529 = vunpack.c.l.b16 %v497
        %v530 = vunpack.c.l.b16 %v498
        %v531 = vunpack.c.l.b16 %v499
        %v532 = vunpack.c.l.b16 %v500
        %v533 = vpack.c.b16 %v518, %v517
        %v534 = vpack.c.b16 %v520, %v519
        %v535 = vpack.c.b16 %v522, %v521
        %v536 = vpack.c.b16 %v524, %v523
        %v537 = vpack.c.b16 %v526, %v525
        %v538 = vpack.c.b16 %v528, %v527
        %v539 = vpack.c.b16 %v530, %v529
        %v540 = vpack.c.b16 %v532, %v531
        %549 = vmatprep.subr.bf16.mxu0 0
        %550 = vmatpush1.bf16.msra.mxu0 %v533
        %551 = vmatprep.subr.bf16.mxu0 0
        %552 = vmatpush1.bf16.msra.mxu0 %v534
        %553 = vmatprep.subr.bf16.mxu0 0
        %554 = vmatpush1.bf16.msra.mxu0 %v535
        %555 = vmatprep.subr.bf16.mxu0 0
        %556 = vmatpush1.bf16.msra.mxu0 %v536
        %557 = vmatprep.subr.bf16.mxu0 0
        %558 = vmatpush1.bf16.msra.mxu0 %v537
        %559 = vmatprep.subr.bf16.mxu0 0
        %560 = vmatpush1.bf16.msra.mxu0 %v538
        %561 = vmatprep.subr.bf16.mxu0 0
        %562 = vmatpush1.bf16.msra.mxu0 %v539
        %563 = vmatprep.subr.bf16.mxu0 0
        %564 = vmatpush1.bf16.msra.mxu0 %v540
        %565 = vmatprep.subr.bf16.mxu0 0
        %566 = vmatpush1.bf16.msra.mxu0 0
        %567 = vmatprep.subr.bf16.mxu0 0
        %568 = vmatpush1.bf16.msra.mxu0 0
        %569 = vmatprep.subr.bf16.mxu0 0
        %570 = vmatpush1.bf16.msra.mxu0 0
        %571 = vmatprep.subr.bf16.mxu0 0
        %572 = vmatpush1.bf16.msra.mxu0 0
        %573 = vmatprep.subr.bf16.mxu0 0
        %574 = vmatpush1.bf16.msra.mxu0 0
        %575 = vmatprep.subr.bf16.mxu0 0
        %576 = vmatpush1.bf16.msra.mxu0 0
        %577 = vmatprep.subr.bf16.mxu0 0
        %578 = vmatpush1.bf16.msra.mxu0 0
        %579 = vmatprep.subr.bf16.mxu0 0
        %580 = vmatpush1.bf16.msra.mxu0 0
        %581 = vmatprep.mubr.bf16.mxu0 0
        %582 = vmatmul.mubr.bf16.gmra.mrb[0].mxu0 %v481
        %v583 = vpop.f32.mrb[0].mxu0
        %v584 = vadd.f32 0.0, %v583
        %v585 = vpop.f32.mrb[0].mxu0
        %v586 = vpop.f32.mrb[0].mxu0
        %v587 = vadd.f32 0.0, %v586
        %v588 = vpop.f32.mrb[0].mxu0
        %589 = vmatprep.mubr.bf16.mxu0 0
        %590 = vmatmul.mubr.bf16.gmra.mrb[0].mxu0 %v482
        %v591 = vpop.f32.mrb[0].mxu0
        %v592 = vpop.f32.mrb[0].mxu0
        %v593 = vpop.f32.mrb[0].mxu0
        %v594 = vadd.f32 0.0, %v593
        %v595 = vpop.f32.mrb[0].mxu0
        %596 = vmatprep.mubr.bf16.mxu0 0
        %597 = vmatmul.mubr.bf16.gmra.mrb[0].mxu0 %v483
        %v598 = vpop.f32.mrb[0].mxu0
        %v599 = vadd.f32 0.0, %v598
        %v600 = vpop.f32.mrb[0].mxu0
        %v601 = vpop.f32.mrb[0].mxu0
        %v602 = vpop.f32.mrb[0].mxu0
        %603 = vdwg.mxu0
        %v620 = vunpack.c.l.b16 %v459
        %v621 = vunpack.c.l.b16 %v460
        %v622 = vunpack.c.l.b16 %v461
        %v623 = vunpack.c.l.b16 %v462
        %v624 = vunpack.c.l.b16 %v463
        %v625 = vunpack.c.l.b16 %v464
        %v626 = vunpack.c.l.b16 %v465
        %v627 = vunpack.c.l.b16 %v466
        %v628 = vunpack.c.l.b16 %v467
        %v629 = vunpack.c.l.b16 %v468
        %v630 = vunpack.c.l.b16 %v469
        %v631 = vunpack.c.l.b16 %v470
        %v632 = vunpack.c.l.b16 %v471
        %v633 = vunpack.c.l.b16 %v472
        %v634 = vunpack.c.l.b16 %v473
        %v635 = vunpack.c.l.b16 %v474
        %v636 = vpack.c.b16 %v621, %v620
        %v637 = vpack.c.b16 %v623, %v622
        %v638 = vpack.c.b16 %v625, %v624
        %v639 = vpack.c.b16 %v627, %v626
        %v640 = vpack.c.b16 %v629, %v628
        %v641 = vpack.c.b16 %v631, %v630
        %v642 = vpack.c.b16 %v633, %v632
        %v643 = vpack.c.b16 %v635, %v634
        %652 = vmatprep.subr.bf16.mxu0 0
        %653 = vmatpush1.bf16.msra.mxu0 %v636
        %654 = vmatprep.subr.bf16.mxu0 0
        %655 = vmatpush1.bf16.msra.mxu0 %v637
        %656 = vmatprep.subr.bf16.mxu0 0
        %657 = vmatpush1.bf16.msra.mxu0 %v638
        %658 = vmatprep.subr.bf16.mxu0 0
        %659 = vmatpush1.bf16.msra.mxu0 %v639
        %660 = vmatprep.subr.bf16.mxu0 0
        %661 = vmatpush1.bf16.msra.mxu0 %v640
        %662 = vmatprep.subr.bf16.mxu0 0
        %663 = vmatpush1.bf16.msra.mxu0 %v641
        %664 = vmatprep.subr.bf16.mxu0 0
        %665 = vmatpush1.bf16.msra.mxu0 %v642
        %666 = vmatprep.subr.bf16.mxu0 0
        %667 = vmatpush1.bf16.msra.mxu0 %v643
        %668 = vmatprep.subr.bf16.mxu0 0
        %669 = vmatpush1.bf16.msra.mxu0 0
        %670 = vmatprep.subr.bf16.mxu0 0
        %671 = vmatpush1.bf16.msra.mxu0 0
        %672 = vmatprep.subr.bf16.mxu0 0
        %673 = vmatpush1.bf16.msra.mxu0 0
        %674 = vmatprep.subr.bf16.mxu0 0
        %675 = vmatpush1.bf16.msra.mxu0 0
        %676 = vmatprep.subr.bf16.mxu0 0
        %677 = vmatpush1.bf16.msra.mxu0 0
        %678 = vmatprep.subr.bf16.mxu0 0
        %679 = vmatpush1.bf16.msra.mxu0 0
        %680 = vmatprep.subr.bf16.mxu0 0
        %681 = vmatpush1.bf16.msra.mxu0 0
        %682 = vmatprep.subr.bf16.mxu0 0
        %683 = vmatpush1.bf16.msra.mxu0 0
        %684 = vmatprep.mubr.bf16.mxu0 0
        %685 = vmatmul.mubr.bf16.gmra.mrb[0].mxu0 %v456
        %v686 = vpop.f32.mrb[0].mxu0
        %v687 = vadd.f32 %v584, %v686
        %v688 = vpop.f32.mrb[0].mxu0
        %v689 = vpop.f32.mrb[0].mxu0
        %v690 = vadd.f32 %v587, %v689
        %v691 = vpop.f32.mrb[0].mxu0
        %692 = vmatprep.mubr.bf16.mxu0 0
        %693 = vmatmul.mubr.bf16.gmra.mrb[0].mxu0 %v457
        %v694 = vpop.f32.mrb[0].mxu0
        %v695 = vpop.f32.mrb[0].mxu0
        %v696 = vpop.f32.mrb[0].mxu0
        %v697 = vadd.f32 %v594, %v696
        %v698 = vpop.f32.mrb[0].mxu0
        %699 = vmatprep.mubr.bf16.mxu0 0
        %700 = vmatmul.mubr.bf16.gmra.mrb[0].mxu0 %v458
        %v701 = vpop.f32.mrb[0].mxu0
        %v702 = vadd.f32 %v599, %v701
        %v703 = vpop.f32.mrb[0].mxu0
        %v704 = vpop.f32.mrb[0].mxu0
        %v705 = vpop.f32.mrb[0].mxu0
        %706 = vdwg.mxu0
        %v707 = vld [vmem:[#allocation2 + $0x2] sm:$0xff]
        %v708 = vld [vmem:[#allocation2 + $0xa] sm:$0xff]
        %v709 = vld [vmem:[#allocation2 + $0x12] sm:$0xff]
        %v710 = vld [vmem:[#allocation2 + $0x1a] sm:$0xff]
        %v711 = vld [vmem:[#allocation2 + $0x22] sm:$0xff]
        %v712 = vld [vmem:[#allocation2 + $0x2a] sm:$0x3f]
        %v713 = vpack.c.bf16 %v708, %v707
        %v714 = vpack.c.bf16 %v710, %v709
        %v715 = vpack.c.bf16 %v712, %v711
        %s716 = scalar_lea.vmem [#allocation7], 128
        %v717 = vld [vmem:[%s716] sm:$0xf]
        %v718 = vld [vmem:[%s716 + $0x4] sm:$0xf]
        %v719 = vld [vmem:[%s716 + $0x8] sm:$0xf]
        %v720 = vld [vmem:[%s716 + $0xc] sm:$0xf]
        %v721 = vld [vmem:[%s716 + $0x10] sm:$0xf]
        %v722 = vld [vmem:[%s716 + $0x14] sm:$0xf]
        %v723 = vld [vmem:[%s716 + $0x18] sm:$0xf]
        %v724 = vld [vmem:[%s716 + $0x1c] sm:$0xf]
        %v725 = vld [vmem:[%s716 + $0x20] sm:$0xf]
        %v726 = vld [vmem:[%s716 + $0x24] sm:$0xf]
        %v727 = vld [vmem:[%s716 + $0x28] sm:$0xf]
        %v728 = vld [vmem:[%s716 + $0x2c] sm:$0xf]
        %v729 = vld [vmem:[%s716 + $0x30] sm:$0xf]
        %v730 = vld [vmem:[%s716 + $0x34] sm:$0xf]
        %v731 = vld [vmem:[%s716 + $0x38] sm:$0xf]
        %v732 = vld [vmem:[%s716 + $0x3c] sm:$0xf]
        %v749 = vunpack.c.l.b16 %v717
        %v750 = vunpack.c.l.b16 %v718
        %v751 = vunpack.c.l.b16 %v719
        %v752 = vunpack.c.l.b16 %v720
        %v753 = vunpack.c.l.b16 %v721
        %v754 = vunpack.c.l.b16 %v722
        %v755 = vunpack.c.l.b16 %v723
        %v756 = vunpack.c.l.b16 %v724
        %v757 = vunpack.c.l.b16 %v725
        %v758 = vunpack.c.l.b16 %v726
        %v759 = vunpack.c.l.b16 %v727
        %v760 = vunpack.c.l.b16 %v728
        %v761 = vunpack.c.l.b16 %v729
        %v762 = vunpack.c.l.b16 %v730
        %v763 = vunpack.c.l.b16 %v731
        %v764 = vunpack.c.l.b16 %v732
        %v765 = vpack.c.b16 %v750, %v749
        %v766 = vpack.c.b16 %v752, %v751
        %v767 = vpack.c.b16 %v754, %v753
        %v768 = vpack.c.b16 %v756, %v755
        %v769 = vpack.c.b16 %v758, %v757
        %v770 = vpack.c.b16 %v760, %v759
        %v771 = vpack.c.b16 %v762, %v761
        %v772 = vpack.c.b16 %v764, %v763
        %781 = vmatprep.subr.bf16.mxu0 0
        %782 = vmatpush1.bf16.msra.mxu0 %v765
        %783 = vmatprep.subr.bf16.mxu0 0
        %784 = vmatpush1.bf16.msra.mxu0 %v766
        %785 = vmatprep.subr.bf16.mxu0 0
        %786 = vmatpush1.bf16.msra.mxu0 %v767
        %787 = vmatprep.subr.bf16.mxu0 0
        %788 = vmatpush1.bf16.msra.mxu0 %v768
        %789 = vmatprep.subr.bf16.mxu0 0
        %790 = vmatpush1.bf16.msra.mxu0 %v769
        %791 = vmatprep.subr.bf16.mxu0 0
        %792 = vmatpush1.bf16.msra.mxu0 %v770
        %793 = vmatprep.subr.bf16.mxu0 0
        %794 = vmatpush1.bf16.msra.mxu0 %v771
        %795 = vmatprep.subr.bf16.mxu0 0
        %796 = vmatpush1.bf16.msra.mxu0 %v772
        %797 = vmatprep.subr.bf16.mxu0 0
        %798 = vmatpush1.bf16.msra.mxu0 0
        %799 = vmatprep.subr.bf16.mxu0 0
        %800 = vmatpush1.bf16.msra.mxu0 0
        %801 = vmatprep.subr.bf16.mxu0 0
        %802 = vmatpush1.bf16.msra.mxu0 0
        %803 = vmatprep.subr.bf16.mxu0 0
        %804 = vmatpush1.bf16.msra.mxu0 0
        %805 = vmatprep.subr.bf16.mxu0 0
        %806 = vmatpush1.bf16.msra.mxu0 0
        %807 = vmatprep.subr.bf16.mxu0 0
        %808 = vmatpush1.bf16.msra.mxu0 0
        %809 = vmatprep.subr.bf16.mxu0 0
        %810 = vmatpush1.bf16.msra.mxu0 0
        %811 = vmatprep.subr.bf16.mxu0 0
        %812 = vmatpush1.bf16.msra.mxu0 0
        %813 = vmatprep.mubr.bf16.mxu0 0
        %814 = vmatmul.mubr.bf16.gmra.mrb[0].mxu0 %v713
        %v815 = vpop.f32.mrb[0].mxu0
        %v816 = vadd.f32 0.0, %v815
        %v817 = vpop.f32.mrb[0].mxu0
        %v818 = vpop.f32.mrb[0].mxu0
        %v819 = vadd.f32 0.0, %v818
        %v820 = vpop.f32.mrb[0].mxu0
        %821 = vmatprep.mubr.bf16.mxu0 0
        %822 = vmatmul.mubr.bf16.gmra.mrb[0].mxu0 %v714
        %v823 = vpop.f32.mrb[0].mxu0
        %v824 = vpop.f32.mrb[0].mxu0
        %v825 = vpop.f32.mrb[0].mxu0
        %v826 = vadd.f32 0.0, %v825
        %v827 = vpop.f32.mrb[0].mxu0
        %828 = vmatprep.mubr.bf16.mxu0 0
        %829 = vmatmul.mubr.bf16.gmra.mrb[0].mxu0 %v715
        %v830 = vpop.f32.mrb[0].mxu0
        %v831 = vadd.f32 0.0, %v830
        %v832 = vpop.f32.mrb[0].mxu0
        %v833 = vpop.f32.mrb[0].mxu0
        %v834 = vpop.f32.mrb[0].mxu0
        %835 = vdwg.mxu0
        %v836 = vadd.f32 %v687, %v816
        %v837 = vadd.f32 %v690, %v819
        %v838 = vadd.f32 %v697, %v826
        %v839 = vadd.f32 %v702, %v831
        %v840 = vld [vmem:[%s4] sm:$0x1]
        %v842 = vlaneseq
        %v843 = vshrl.u32 %v842, 7
        %v844 = vsub.s32 0, %v843
        %v845 = vrot.slane %v840, %v844
        %v847 = vadd.f32 %v836, %v845
        %v848 = vadd.f32 %v837, %v845
        %v849 = vadd.f32 %v838, %v845
        %v850 = vadd.f32 %v839, %v845
        %v851 = vld [vmem:[%s5] sm:$0x1]
        %vm852 = vcmp.ge.f32.partialorder %v847, 0.0
        %vm853 = vcmp.ge.f32.partialorder %v848, 0.0
        %vm854 = vcmp.ge.f32.partialorder %v849, 0.0
        %vm855 = vcmp.ge.f32.partialorder %v850, 0.0
        %v857 = vlaneseq
        %v858 = vshrl.u32 %v857, 7
        %v859 = vsub.s32 0, %v858
        %v860 = vrot.slane %v851, %v859
        %v862 = vmul.f32 %v860, %v847
        %v863 = vmul.f32 %v860, %v848
        %v864 = vmul.f32 %v860, %v849
        %v865 = vmul.f32 %v860, %v850
        %v866 = vsel %vm852, %v847, %v862
        %v867 = vsel %vm853, %v848, %v863
        %v868 = vsel %vm854, %v849, %v864
        %v869 = vsel %vm855, %v850, %v865
        %870 = vst [vmem:[#allocation3 + $0x1] sm:$0xff] %v866
        %871 = vst [vmem:[#allocation3 + $0x9] sm:$0xff] %v867
        %872 = vst [vmem:[#allocation3 + $0x19] sm:$0xff] %v868
        %873 = vst [vmem:[#allocation3 + $0x21] sm:$0xff] %v869
        %v874 = vld [vmem:[#allocation3] sm:$0xff]
        %v875 = vld [vmem:[#allocation3 + $0x8] sm:$0xff]
        %v876 = vld [vmem:[#allocation3 + $0x10] sm:$0xff]
        %v877 = vld [vmem:[#allocation3 + $0x18] sm:$0xff]
        %v878 = vld [vmem:[#allocation3 + $0x20] sm:$0xff]
        %v879 = vld [vmem:[#allocation3 + $0x28] sm:$0x3f]
        %v880 = vpack.c.bf16 %v875, %v874
        %v881 = vpack.c.bf16 %v877, %v876
        %v882 = vpack.c.bf16 %v879, %v878
        %v883 = vld [vmem:[#allocation9] sm:$0xf]
        %v884 = vld [vmem:[#allocation9 + $0x4] sm:$0xf]
        %v885 = vld [vmem:[#allocation9 + $0x8] sm:$0xf]
        %v886 = vld [vmem:[#allocation9 + $0xc] sm:$0xf]
        %v887 = vld [vmem:[#allocation9 + $0x10] sm:$0xf]
        %v888 = vld [vmem:[#allocation9 + $0x14] sm:$0xf]
        %v889 = vld [vmem:[#allocation9 + $0x18] sm:$0xf]
        %v890 = vld [vmem:[#allocation9 + $0x1c] sm:$0xf]
        %v891 = vld [vmem:[#allocation9 + $0x20] sm:$0xf]
        %v892 = vld [vmem:[#allocation9 + $0x24] sm:$0xf]
        %v893 = vld [vmem:[#allocation9 + $0x28] sm:$0xf]
        %v894 = vld [vmem:[#allocation9 + $0x2c] sm:$0xf]
        %v895 = vld [vmem:[#allocation9 + $0x30] sm:$0xf]
        %v896 = vld [vmem:[#allocation9 + $0x34] sm:$0xf]
        %v897 = vld [vmem:[#allocation9 + $0x38] sm:$0xf]
        %v898 = vld [vmem:[#allocation9 + $0x3c] sm:$0xf]
        %v899 = vld [vmem:[#allocation3 + $0x1] sm:$0xff]
        %v900 = vld [vmem:[#allocation3 + $0x9] sm:$0xff]
        %v901 = vld [vmem:[#allocation3 + $0x11] sm:$0xff]
        %v902 = vld [vmem:[#allocation3 + $0x19] sm:$0xff]
        %v903 = vld [vmem:[#allocation3 + $0x21] sm:$0xff]
        %v904 = vld [vmem:[#allocation3 + $0x29] sm:$0x3f]
        %v905 = vpack.c.bf16 %v900, %v899
        %v906 = vpack.c.bf16 %v902, %v901
        %v907 = vpack.c.bf16 %v904, %v903
        %s908 = scalar_lea.vmem [#allocation9], 64
        %v909 = vld [vmem:[%s908] sm:$0xf]
        %v910 = vld [vmem:[%s908 + $0x4] sm:$0xf]
        %v911 = vld [vmem:[%s908 + $0x8] sm:$0xf]
        %v912 = vld [vmem:[%s908 + $0xc] sm:$0xf]
        %v913 = vld [vmem:[%s908 + $0x10] sm:$0xf]
        %v914 = vld [vmem:[%s908 + $0x14] sm:$0xf]
        %v915 = vld [vmem:[%s908 + $0x18] sm:$0xf]
        %v916 = vld [vmem:[%s908 + $0x1c] sm:$0xf]
        %v917 = vld [vmem:[%s908 + $0x20] sm:$0xf]
        %v918 = vld [vmem:[%s908 + $0x24] sm:$0xf]
        %v919 = vld [vmem:[%s908 + $0x28] sm:$0xf]
        %v920 = vld [vmem:[%s908 + $0x2c] sm:$0xf]
        %v921 = vld [vmem:[%s908 + $0x30] sm:$0xf]
        %v922 = vld [vmem:[%s908 + $0x34] sm:$0xf]
        %v923 = vld [vmem:[%s908 + $0x38] sm:$0xf]
        %v924 = vld [vmem:[%s908 + $0x3c] sm:$0xf]
        %v941 = vunpack.c.l.b16 %v909
        %v942 = vunpack.c.l.b16 %v910
        %v943 = vunpack.c.l.b16 %v911
        %v944 = vunpack.c.l.b16 %v912
        %v945 = vunpack.c.l.b16 %v913
        %v946 = vunpack.c.l.b16 %v914
        %v947 = vunpack.c.l.b16 %v915
        %v948 = vunpack.c.l.b16 %v916
        %v949 = vunpack.c.l.b16 %v917
        %v950 = vunpack.c.l.b16 %v918
        %v951 = vunpack.c.l.b16 %v919
        %v952 = vunpack.c.l.b16 %v920
        %v953 = vunpack.c.l.b16 %v921
        %v954 = vunpack.c.l.b16 %v922
        %v955 = vunpack.c.l.b16 %v923
        %v956 = vunpack.c.l.b16 %v924
        %v957 = vpack.c.b16 %v942, %v941
        %v958 = vpack.c.b16 %v944, %v943
        %v959 = vpack.c.b16 %v946, %v945
        %v960 = vpack.c.b16 %v948, %v947
        %v961 = vpack.c.b16 %v950, %v949
        %v962 = vpack.c.b16 %v952, %v951
        %v963 = vpack.c.b16 %v954, %v953
        %v964 = vpack.c.b16 %v956, %v955
        %973 = vmatprep.subr.bf16.mxu0 0
        %974 = vmatpush1.bf16.msra.mxu0 %v957
        %975 = vmatprep.subr.bf16.mxu0 0
        %976 = vmatpush1.bf16.msra.mxu0 %v958
        %977 = vmatprep.subr.bf16.mxu0 0
        %978 = vmatpush1.bf16.msra.mxu0 %v959
        %979 = vmatprep.subr.bf16.mxu0 0
        %980 = vmatpush1.bf16.msra.mxu0 %v960
        %981 = vmatprep.subr.bf16.mxu0 0
        %982 = vmatpush1.bf16.msra.mxu0 %v961
        %983 = vmatprep.subr.bf16.mxu0 0
        %984 = vmatpush1.bf16.msra.mxu0 %v962
        %985 = vmatprep.subr.bf16.mxu0 0
        %986 = vmatpush1.bf16.msra.mxu0 %v963
        %987 = vmatprep.subr.bf16.mxu0 0
        %988 = vmatpush1.bf16.msra.mxu0 %v964
        %989 = vmatprep.subr.bf16.mxu0 0
        %990 = vmatpush1.bf16.msra.mxu0 0
        %991 = vmatprep.subr.bf16.mxu0 0
        %992 = vmatpush1.bf16.msra.mxu0 0
        %993 = vmatprep.subr.bf16.mxu0 0
        %994 = vmatpush1.bf16.msra.mxu0 0
        %995 = vmatprep.subr.bf16.mxu0 0
        %996 = vmatpush1.bf16.msra.mxu0 0
        %997 = vmatprep.subr.bf16.mxu0 0
        %998 = vmatpush1.bf16.msra.mxu0 0
        %999 = vmatprep.subr.bf16.mxu0 0
        %1000 = vmatpush1.bf16.msra.mxu0 0
        %1001 = vmatprep.subr.bf16.mxu0 0
        %1002 = vmatpush1.bf16.msra.mxu0 0
        %1003 = vmatprep.subr.bf16.mxu0 0
        %1004 = vmatpush1.bf16.msra.mxu0 0
        %1005 = vmatprep.mubr.bf16.mxu0 0
        %1006 = vmatmul.mubr.bf16.gmra.mrb[0].mxu0 %v905
        %v1007 = vpop.f32.mrb[0].mxu0
        %v1008 = vadd.f32 0.0, %v1007
        %v1009 = vpop.f32.mrb[0].mxu0
        %v1010 = vpop.f32.mrb[0].mxu0
        %v1011 = vadd.f32 0.0, %v1010
        %v1012 = vpop.f32.mrb[0].mxu0
        %1013 = vmatprep.mubr.bf16.mxu0 0
        %1014 = vmatmul.mubr.bf16.gmra.mrb[0].mxu0 %v906
        %v1015 = vpop.f32.mrb[0].mxu0
        %v1016 = vpop.f32.mrb[0].mxu0
        %v1017 = vpop.f32.mrb[0].mxu0
        %v1018 = vadd.f32 0.0, %v1017
        %v1019 = vpop.f32.mrb[0].mxu0
        %1020 = vmatprep.mubr.bf16.mxu0 0
        %1021 = vmatmul.mubr.bf16.gmra.mrb[0].mxu0 %v907
        %v1022 = vpop.f32.mrb[0].mxu0
        %v1023 = vadd.f32 0.0, %v1022
        %v1024 = vpop.f32.mrb[0].mxu0
        %v1025 = vpop.f32.mrb[0].mxu0
        %v1026 = vpop.f32.mrb[0].mxu0
        %1027 = vdwg.mxu0
        %v1044 = vunpack.c.l.b16 %v883
        %v1045 = vunpack.c.l.b16 %v884
        %v1046 = vunpack.c.l.b16 %v885
        %v1047 = vunpack.c.l.b16 %v886
        %v1048 = vunpack.c.l.b16 %v887
        %v1049 = vunpack.c.l.b16 %v888
        %v1050 = vunpack.c.l.b16 %v889
        %v1051 = vunpack.c.l.b16 %v890
        %v1052 = vunpack.c.l.b16 %v891
        %v1053 = vunpack.c.l.b16 %v892
        %v1054 = vunpack.c.l.b16 %v893
        %v1055 = vunpack.c.l.b16 %v894
        %v1056 = vunpack.c.l.b16 %v895
        %v1057 = vunpack.c.l.b16 %v896
        %v1058 = vunpack.c.l.b16 %v897
        %v1059 = vunpack.c.l.b16 %v898
        %v1060 = vpack.c.b16 %v1045, %v1044
        %v1061 = vpack.c.b16 %v1047, %v1046
        %v1062 = vpack.c.b16 %v1049, %v1048
        %v1063 = vpack.c.b16 %v1051, %v1050
        %v1064 = vpack.c.b16 %v1053, %v1052
        %v1065 = vpack.c.b16 %v1055, %v1054
        %v1066 = vpack.c.b16 %v1057, %v1056
        %v1067 = vpack.c.b16 %v1059, %v1058
        %1076 = vmatprep.subr.bf16.mxu0 0
        %1077 = vmatpush1.bf16.msra.mxu0 %v1060
        %1078 = vmatprep.subr.bf16.mxu0 0
        %1079 = vmatpush1.bf16.msra.mxu0 %v1061
        %1080 = vmatprep.subr.bf16.mxu0 0
        %1081 = vmatpush1.bf16.msra.mxu0 %v1062
        %1082 = vmatprep.subr.bf16.mxu0 0
        %1083 = vmatpush1.bf16.msra.mxu0 %v1063
        %1084 = vmatprep.subr.bf16.mxu0 0
        %1085 = vmatpush1.bf16.msra.mxu0 %v1064
        %1086 = vmatprep.subr.bf16.mxu0 0
        %1087 = vmatpush1.bf16.msra.mxu0 %v1065
        %1088 = vmatprep.subr.bf16.mxu0 0
        %1089 = vmatpush1.bf16.msra.mxu0 %v1066
        %1090 = vmatprep.subr.bf16.mxu0 0
        %1091 = vmatpush1.bf16.msra.mxu0 %v1067
        %1092 = vmatprep.subr.bf16.mxu0 0
        %1093 = vmatpush1.bf16.msra.mxu0 0
        %1094 = vmatprep.subr.bf16.mxu0 0
        %1095 = vmatpush1.bf16.msra.mxu0 0
        %1096 = vmatprep.subr.bf16.mxu0 0
        %1097 = vmatpush1.bf16.msra.mxu0 0
        %1098 = vmatprep.subr.bf16.mxu0 0
        %1099 = vmatpush1.bf16.msra.mxu0 0
        %1100 = vmatprep.subr.bf16.mxu0 0
        %1101 = vmatpush1.bf16.msra.mxu0 0
        %1102 = vmatprep.subr.bf16.mxu0 0
        %1103 = vmatpush1.bf16.msra.mxu0 0
        %1104 = vmatprep.subr.bf16.mxu0 0
        %1105 = vmatpush1.bf16.msra.mxu0 0
        %1106 = vmatprep.subr.bf16.mxu0 0
        %1107 = vmatpush1.bf16.msra.mxu0 0
        %1108 = vmatprep.mubr.bf16.mxu0 0
        %1109 = vmatmul.mubr.bf16.gmra.mrb[0].mxu0 %v880
        %v1110 = vpop.f32.mrb[0].mxu0
        %v1111 = vadd.f32 %v1008, %v1110
        %v1112 = vpop.f32.mrb[0].mxu0
        %v1113 = vpop.f32.mrb[0].mxu0
        %v1114 = vadd.f32 %v1011, %v1113
        %v1115 = vpop.f32.mrb[0].mxu0
        %1116 = vmatprep.mubr.bf16.mxu0 0
        %1117 = vmatmul.mubr.bf16.gmra.mrb[0].mxu0 %v881
        %v1118 = vpop.f32.mrb[0].mxu0
        %v1119 = vpop.f32.mrb[0].mxu0
        %v1120 = vpop.f32.mrb[0].mxu0
        %v1121 = vadd.f32 %v1018, %v1120
        %v1122 = vpop.f32.mrb[0].mxu0
        %1123 = vmatprep.mubr.bf16.mxu0 0
        %1124 = vmatmul.mubr.bf16.gmra.mrb[0].mxu0 %v882
        %v1125 = vpop.f32.mrb[0].mxu0
        %v1126 = vadd.f32 %v1023, %v1125
        %v1127 = vpop.f32.mrb[0].mxu0
        %v1128 = vpop.f32.mrb[0].mxu0
        %v1129 = vpop.f32.mrb[0].mxu0
        %1130 = vdwg.mxu0
        %v1131 = vld [vmem:[#allocation3 + $0x2] sm:$0xff]
        %v1132 = vld [vmem:[#allocation3 + $0xa] sm:$0xff]
        %v1133 = vld [vmem:[#allocation3 + $0x12] sm:$0xff]
        %v1134 = vld [vmem:[#allocation3 + $0x1a] sm:$0xff]
        %v1135 = vld [vmem:[#allocation3 + $0x22] sm:$0xff]
        %v1136 = vld [vmem:[#allocation3 + $0x2a] sm:$0x3f]
        %v1137 = vpack.c.bf16 %v1132, %v1131
        %v1138 = vpack.c.bf16 %v1134, %v1133
        %v1139 = vpack.c.bf16 %v1136, %v1135
        %s1140 = scalar_lea.vmem [#allocation9], 128
        %v1141 = vld [vmem:[%s1140] sm:$0xf]
        %v1142 = vld [vmem:[%s1140 + $0x4] sm:$0xf]
        %v1143 = vld [vmem:[%s1140 + $0x8] sm:$0xf]
        %v1144 = vld [vmem:[%s1140 + $0xc] sm:$0xf]
        %v1145 = vld [vmem:[%s1140 + $0x10] sm:$0xf]
        %v1146 = vld [vmem:[%s1140 + $0x14] sm:$0xf]
        %v1147 = vld [vmem:[%s1140 + $0x18] sm:$0xf]
        %v1148 = vld [vmem:[%s1140 + $0x1c] sm:$0xf]
        %v1149 = vld [vmem:[%s1140 + $0x20] sm:$0xf]
        %v1150 = vld [vmem:[%s1140 + $0x24] sm:$0xf]
        %v1151 = vld [vmem:[%s1140 + $0x28] sm:$0xf]
        %v1152 = vld [vmem:[%s1140 + $0x2c] sm:$0xf]
        %v1153 = vld [vmem:[%s1140 + $0x30] sm:$0xf]
        %v1154 = vld [vmem:[%s1140 + $0x34] sm:$0xf]
        %v1155 = vld [vmem:[%s1140 + $0x38] sm:$0xf]
        %v1156 = vld [vmem:[%s1140 + $0x3c] sm:$0xf]
        %v1173 = vunpack.c.l.b16 %v1141
        %v1174 = vunpack.c.l.b16 %v1142
        %v1175 = vunpack.c.l.b16 %v1143
        %v1176 = vunpack.c.l.b16 %v1144
        %v1177 = vunpack.c.l.b16 %v1145
        %v1178 = vunpack.c.l.b16 %v1146
        %v1179 = vunpack.c.l.b16 %v1147
        %v1180 = vunpack.c.l.b16 %v1148
        %v1181 = vunpack.c.l.b16 %v1149
        %v1182 = vunpack.c.l.b16 %v1150
        %v1183 = vunpack.c.l.b16 %v1151
        %v1184 = vunpack.c.l.b16 %v1152
        %v1185 = vunpack.c.l.b16 %v1153
        %v1186 = vunpack.c.l.b16 %v1154
        %v1187 = vunpack.c.l.b16 %v1155
        %v1188 = vunpack.c.l.b16 %v1156
        %v1189 = vpack.c.b16 %v1174, %v1173
        %v1190 = vpack.c.b16 %v1176, %v1175
        %v1191 = vpack.c.b16 %v1178, %v1177
        %v1192 = vpack.c.b16 %v1180, %v1179
        %v1193 = vpack.c.b16 %v1182, %v1181
        %v1194 = vpack.c.b16 %v1184, %v1183
        %v1195 = vpack.c.b16 %v1186, %v1185
        %v1196 = vpack.c.b16 %v1188, %v1187
        %1205 = vmatprep.subr.bf16.mxu0 0
        %1206 = vmatpush1.bf16.msra.mxu0 %v1189
        %1207 = vmatprep.subr.bf16.mxu0 0
        %1208 = vmatpush1.bf16.msra.mxu0 %v1190
        %1209 = vmatprep.subr.bf16.mxu0 0
        %1210 = vmatpush1.bf16.msra.mxu0 %v1191
        %1211 = vmatprep.subr.bf16.mxu0 0
        %1212 = vmatpush1.bf16.msra.mxu0 %v1192
        %1213 = vmatprep.subr.bf16.mxu0 0
        %1214 = vmatpush1.bf16.msra.mxu0 %v1193
        %1215 = vmatprep.subr.bf16.mxu0 0
        %1216 = vmatpush1.bf16.msra.mxu0 %v1194
        %1217 = vmatprep.subr.bf16.mxu0 0
        %1218 = vmatpush1.bf16.msra.mxu0 %v1195
        %1219 = vmatprep.subr.bf16.mxu0 0
        %1220 = vmatpush1.bf16.msra.mxu0 %v1196
        %1221 = vmatprep.subr.bf16.mxu0 0
        %1222 = vmatpush1.bf16.msra.mxu0 0
        %1223 = vmatprep.subr.bf16.mxu0 0
        %1224 = vmatpush1.bf16.msra.mxu0 0
        %1225 = vmatprep.subr.bf16.mxu0 0
        %1226 = vmatpush1.bf16.msra.mxu0 0
        %1227 = vmatprep.subr.bf16.mxu0 0
        %1228 = vmatpush1.bf16.msra.mxu0 0
        %1229 = vmatprep.subr.bf16.mxu0 0
        %1230 = vmatpush1.bf16.msra.mxu0 0
        %1231 = vmatprep.subr.bf16.mxu0 0
        %1232 = vmatpush1.bf16.msra.mxu0 0
        %1233 = vmatprep.subr.bf16.mxu0 0
        %1234 = vmatpush1.bf16.msra.mxu0 0
        %1235 = vmatprep.subr.bf16.mxu0 0
        %1236 = vmatpush1.bf16.msra.mxu0 0
        %1237 = vmatprep.mubr.bf16.mxu0 0
        %1238 = vmatmul.mubr.bf16.gmra.mrb[0].mxu0 %v1137
        %v1239 = vpop.f32.mrb[0].mxu0
        %v1240 = vadd.f32 0.0, %v1239
        %v1241 = vpop.f32.mrb[0].mxu0
        %v1242 = vpop.f32.mrb[0].mxu0
        %v1243 = vadd.f32 0.0, %v1242
        %v1244 = vpop.f32.mrb[0].mxu0
        %1245 = vmatprep.mubr.bf16.mxu0 0
        %1246 = vmatmul.mubr.bf16.gmra.mrb[0].mxu0 %v1138
        %v1247 = vpop.f32.mrb[0].mxu0
        %v1248 = vpop.f32.mrb[0].mxu0
        %v1249 = vpop.f32.mrb[0].mxu0
        %v1250 = vadd.f32 0.0, %v1249
        %v1251 = vpop.f32.mrb[0].mxu0
        %1252 = vmatprep.mubr.bf16.mxu0 0
        %1253 = vmatmul.mubr.bf16.gmra.mrb[0].mxu0 %v1139
        %v1254 = vpop.f32.mrb[0].mxu0
        %v1255 = vadd.f32 0.0, %v1254
        %v1256 = vpop.f32.mrb[0].mxu0
        %v1257 = vpop.f32.mrb[0].mxu0
        %v1258 = vpop.f32.mrb[0].mxu0
        %1259 = vdwg.mxu0
        %v1260 = vadd.f32 %v1111, %v1240
        %v1261 = vadd.f32 %v1114, %v1243
        %v1262 = vadd.f32 %v1121, %v1250
        %v1263 = vadd.f32 %v1126, %v1255
        %v1264 = vld [vmem:[%s7] sm:$0x1]
        %v1266 = vlaneseq
        %v1267 = vshrl.u32 %v1266, 7
        %v1268 = vsub.s32 0, %v1267
        %v1269 = vrot.slane %v1264, %v1268
        %v1271 = vadd.f32 %v1260, %v1269
        %v1272 = vadd.f32 %v1261, %v1269
        %v1273 = vadd.f32 %v1262, %v1269
        %v1274 = vadd.f32 %v1263, %v1269
        %v1275 = vld [vmem:[%s8] sm:$0x1]
        %v1276 = vld [vmem:[%s9] sm:$0x1]
        %vm1277 = vcmp.ge.f32.partialorder %v1271, 0.0
        %vm1278 = vcmp.ge.f32.partialorder %v1272, 0.0
        %vm1279 = vcmp.ge.f32.partialorder %v1273, 0.0
        %vm1280 = vcmp.ge.f32.partialorder %v1274, 0.0
        %v1282 = vlaneseq
        %v1283 = vshrl.u32 %v1282, 7
        %v1284 = vsub.s32 0, %v1283
        %v1285 = vrot.slane %v1275, %v1284
        %v1287 = vmul.f32 %v1285, %v1271
        %v1288 = vmul.f32 %v1285, %v1272
        %v1289 = vmul.f32 %v1285, %v1273
        %v1290 = vmul.f32 %v1285, %v1274
        %v1291 = vsel %vm1277, %v1271, %v1287
        %v1292 = vsel %vm1278, %v1272, %v1288
        %v1293 = vsel %vm1279, %v1273, %v1289
        %v1294 = vsel %vm1280, %v1274, %v1290
        %vm1295 = vcmp.ge.f32.partialorder %v1291, 0.0
        %vm1296 = vcmp.ge.f32.partialorder %v1292, 0.0
        %vm1297 = vcmp.ge.f32.partialorder %v1293, 0.0
        %vm1298 = vcmp.ge.f32.partialorder %v1294, 0.0
        %v1300 = vlaneseq
        %v1301 = vshrl.u32 %v1300, 7
        %v1302 = vsub.s32 0, %v1301
        %v1303 = vrot.slane %v1276, %v1302
        %v1305 = vmul.f32 %v1303, %v1291
        %v1306 = vmul.f32 %v1303, %v1292
        %v1307 = vmul.f32 %v1303, %v1293
        %v1308 = vmul.f32 %v1303, %v1294
        %v1309 = vsel %vm1295, %v1291, %v1305
        %v1310 = vsel %vm1296, %v1292, %v1306
        %v1311 = vsel %vm1297, %v1293, %v1307
        %v1312 = vsel %vm1298, %v1294, %v1308
        %1313 = vst [vmem:[%s407] sm:$0xff] %v1309
        %1314 = vst [vmem:[%s407 + $0x8] sm:$0xff] %v1310
        %s1315 = scalar_lea.vmem %s407, 16 [#allocation10]
        %1316 = vst [vmem:[%s1315] sm:$0xff] %v1311
        %1317 = vst [vmem:[%s1315 + $0x8] sm:$0xff] %v1312
        %s1318 = sand.u32 %s251, 1
        %s1319 = scalar_lea.sflag [#allocation6], %s1318
        %s1320 = sand.u32 %s251, 1
        %s1321 = smul.addr %s1320, 32
        %s1322 = scalar_lea.vmem [#allocation10], %s1321
        // Predicated region
        $region73: #{tpu_custom_call.1} parent=59 // pred_check
          %p1323 = pneg %p261
        $region74: #{tpu_custom_call.1} parent=59 // pred_check_branch
          %1325 = sbr.rel (%p1323) target = $region76
        $region75: #{tpu_custom_call.1} parent=59 // pred_region
          %s1326 = smul.u32 2, %s28
          %s1328 = ssub.s32 512, 512
          %1329 = vsyncadd %s1319, %s1328
          %s1330 = smul.addr %s1326, 2
          %s1331 = smul.addr %s1330, 128
          %s1332 = scalar_lea.hbm %s10, %s1331
          %s1333 = sshll.u32 %s1322, 4
          %s1334 = int_to_ptr.vmem [resolvable:$true] %s1333
          %1339 = dma.vmem_to_hbm [thread:$0]  %s1334, 512, %s1332, %s1319, 128, 128, 8
        $region76: #{tpu_custom_call.1} parent=59 // pred_fallthru
          _
      $region60: #{tpu_custom_call.1} parent=5 // pred_fallthru
        _
      %p1340 = scmp.le.s32.totalorder 2, %s23
      // Predicated region
      $region77: #{tpu_custom_call.1} parent=5 // pred_check
        %p1341 = pneg %p1340
      $region78: #{tpu_custom_call.1} parent=5 // pred_check_branch
        %1343 = sbr.rel (%p1341) target = $region80
      $region79: #{tpu_custom_call.1} parent=5 // pred_region
        %s1344 = ssub.s32 %s23, 2
        // Predicated region
        $region81: #{tpu_custom_call.1} parent=79 // pred_check
          %p1345 = pneg %p267
        $region82: #{tpu_custom_call.1} parent=79 // pred_check_branch
          %1347 = sbr.rel (%p1345) target = $region84
        $region83: #{tpu_custom_call.1} parent=79 // pred_region
          %s1348 = sand.u32 %s252, 1
          %s1349 = scalar_lea.sflag [#allocation6], %s1348
          %s1350 = sand.u32 %s252, 1
          %s1351 = smul.addr %s1350, 32
          %s1352 = scalar_lea.vmem [#allocation10], %s1351
          %1353 = dma.done %s1349, 512
        $region84: #{tpu_custom_call.1} parent=79 // pred_fallthru
          _
      $region80: #{tpu_custom_call.1} parent=5 // pred_fallthru
        _
    $region6: #{tpu_custom_call.1} parent=1 // loop_footer
      %s27 = sadd.s32 1, %s23
    $region7: #{tpu_custom_call.1} parent=1 // loop_footer_branch
      %22 = sbr.rel target = $region3
    $region8: #{tpu_custom_call.1} parent=1 // loop_exit
      _
    %1354 = vsyncpa [#allocation5], 1
    %s1355 = scalar_lea.sflag [#allocation5], 1
    %1356 = vsyncpa %s1355, 1
    %1357 = vsyncpa [#allocation8], 1
    %1358 = vsyncpa [#allocation6], 1
    %s1359 = scalar_lea.sflag [#allocation6], 1
    %1360 = vsyncpa %s1359, 1

</llo_original>
